<compile_context>
chip_gen: v5e
topology: v5e:2x2
jax: 0.10.0
libtpu: 0.0.40
codegen_flags: <defaults>
</compile_context>

<pallas_src>
import functools

import jax
import jax.numpy as jnp
from jax.experimental import pallas as pl
from jax.experimental.pallas import tpu as pltpu

K = 4          # conv-transpose kernel size
EPS = 1e-5     # InstanceNorm2d default eps (affine=False, biased variance)


def unet_up_kernel(x_ref, w_ref, out_ref, acc_ref, *, H, W):
    """One (batch image, Cout tile) grid step.

    x_ref:   (1, 3, Cin, (H+2)*W) bf16  padded input, pre-sliced at the 3 column offsets
                                        and flattened over (rows, cols):
                                        x_ref[0, j, c, i*W + w] = xpad[c, i, w + j]
    w_ref:   (2, 2, 4, TC, Cin)   bf16  polyphase sub-kernels [dy, dx, tap(2a+b), co, ci]
    out_ref: (1, 2, 2, TC, HW)    bf16  per-parity normalized + ReLU'd conv output
    acc_ref: (2, 2, TC, HW)       f32   VMEM scratch staging the pre-norm conv result
    """
    TC = out_ref.shape[3]
    HW = H * W
    inv_n = 1.0 / (4.0 * HW)              # InstanceNorm averages over Ho*Wo = 4*H*W

    s = jnp.zeros((TC, 1), jnp.float32)
    s2 = jnp.zeros((TC, 1), jnp.float32)

    # ---- conv: per output parity, 4 accumulating (TC, Cin) @ (Cin, HW) bf16 MXU matmuls ----
    for dy in range(2):
        for dx in range(2):
            acc = jnp.zeros((TC, HW), jnp.float32)
            for a in range(2):
                for b in range(2):
                    r = (dy + a) * W                      # static row offset in flat spatial
                    win = x_ref[0, dx + b, :, r:r + HW]   # (Cin, HW) bf16
                    acc = acc + jnp.dot(w_ref[dy, dx, 2 * a + b], win,
                                        preferred_element_type=jnp.float32)
            acc_ref[dy, dx] = acc                         # stage pre-norm result (f32)
            s = s + jnp.sum(acc, axis=1, keepdims=True)
            s2 = s2 + jnp.sum(acc * acc, axis=1, keepdims=True)

    # ---- InstanceNorm2d (affine=False, biased variance) + ReLU, per-channel stats ----
    mean = s * inv_n                                      # (TC, 1)
    var = jnp.maximum(s2 * inv_n - mean * mean, 0.0)      # clamp: E[x^2]-mean^2 can cancel < 0
    inv_std = jax.lax.rsqrt(var + EPS)
    for dy in range(2):
        for dx in range(2):
            v = acc_ref[dy, dx]                           # (TC, HW) f32
            out_ref[0, dy, dx] = jnp.maximum((v - mean) * inv_std, 0.0).astype(out_ref.dtype)


def _pick_cout_tile(cp):
    """Largest Cout tile <= 256 that divides the (sublane-padded) channel count."""
    if cp <= 256:
        return cp
    for cand in (256, 128, 64, 32, 16, 8):
        if cp % cand == 0:
            return cand
    return cp


def unet_up(x_nchw, skip_nchw, weight):
    """x_nchw: (N, Cin, H, W); skip_nchw: (N, Cs, 2H, 2W);
    weight: torch ConvTranspose2d layout (Cin, Cout, 4, 4).
    Returns (N, Cout + Cs, 2H, 2W) matching the PyTorch module forward."""
    N, Cin, H, W = x_nchw.shape
    Cout = weight.shape[1]
    Ho, Wo = 2 * H, 2 * W
    HW = H * W

    # Pad Cout to a multiple of 8 sublanes and pick a "parallel" Cout tile.
    Cp = ((Cout + 7) // 8) * 8
    TC = _pick_cout_tile(Cp)
    n_ctiles = Cp // TC

    # Cast to bf16 BEFORE the pad/stack (halves wrapper HBM traffic), pad spatially by 1
    # (stays NCHW), build the 3 column-shifted slabs and flatten (rows, cols) so every
    # in-kernel window load is a plain static slice.
    xb = x_nchw.astype(jnp.bfloat16)
    xpad = jnp.pad(xb, ((0, 0), (0, 0), (1, 1), (1, 1)))
    xflat = jnp.stack([xpad[:, :, :, j:j + W] for j in range(3)], axis=1)   # (N,3,Cin,H+2,W)
    xflat = xflat.reshape(N, 3, Cin, (H + 2) * W)

    # Polyphase sub-kernels: output parity (dy,dx), window tap (a,b) in the padded input
    # reads original kernel tap (kh,kw) = (3-dy-2a, 3-dx-2b).  Layout (2,2,4,Cp,Cin) so each
    # tap is a standalone (Cout, Cin) matmul LHS (no in-kernel concat).
    w = jnp.transpose(weight.astype(jnp.float32), (2, 3, 1, 0))   # (kh, kw, Cout, Cin)
    w_poly = jnp.stack([
        jnp.stack([
            jnp.stack([w[3 - dy - 2 * a, 3 - dx - 2 * b]
                       for a in range(2) for b in range(2)], axis=0)        # (4, Cout, Cin)
            for dx in range(2)], axis=0)                                    # (2, 4, Cout, Cin)
        for dy in range(2)], axis=0)                                        # (2, 2, 4, Cout, Cin)
    w_poly = jnp.pad(w_poly, ((0, 0), (0, 0), (0, 0), (0, Cp - Cout), (0, 0)))
    w_poly = w_poly.astype(jnp.bfloat16)

    # Per-step VMEM budget: double-buffered ins/outs + f32 staging scratch + headroom.
    x_bytes = 3 * Cin * (H + 2) * W * 2
    w_bytes = 16 * TC * Cin * 2
    o_bytes = 4 * TC * HW * 2
    scratch_bytes = 4 * TC * HW * 4
    vmem_limit = min(max(2 * (x_bytes + w_bytes + o_bytes) + scratch_bytes + (4 << 20),
                         16 << 20), 64 << 20)

    kernel = functools.partial(unet_up_kernel, H=H, W=W)
    out = pl.pallas_call(
        kernel,
        out_shape=jax.ShapeDtypeStruct((N, 2, 2, Cp, HW), jnp.bfloat16),
        grid_spec=pltpu.PrefetchScalarGridSpec(
            num_scalar_prefetch=0,
            grid=(N, n_ctiles),
            in_specs=[
                # x slab is constant along the Cout-tile axis -> DMA'd once and reused.
                pl.BlockSpec((1, 3, Cin, (H + 2) * W), lambda n, c: (n, 0, 0, 0)),
                pl.BlockSpec((2, 2, 4, TC, Cin), lambda n, c: (0, 0, 0, c, 0)),
            ],
            out_specs=pl.BlockSpec((1, 2, 2, TC, HW), lambda n, c: (n, 0, 0, c, 0)),
            scratch_shapes=[pltpu.VMEM((2, 2, TC, HW), jnp.float32)],
        ),
        compiler_params=pltpu.CompilerParams(
            dimension_semantics=("parallel", "parallel"),
            vmem_limit_bytes=vmem_limit,
        ),
    )(xflat, w_poly)

    # Depth-to-space on the bf16 output (half the traffic of f32):
    # (N, dy, dx, Cout, H, W) -> (N, Cout, H, dy, W, dx) -> (N, Cout, Ho, Wo)
    conv = out[:, :, :, :Cout, :].reshape(N, 2, 2, Cout, H, W)
    conv = jnp.transpose(conv, (0, 3, 4, 1, 5, 2)).reshape(N, Cout, Ho, Wo)

    # Channel concat with the skip branch (contiguous NCHW concat, done by XLA).
    return jnp.concatenate([conv.astype(skip_nchw.dtype), skip_nchw], axis=1)


def unet_up_reference(x_nchw, skip_nchw, weight):
    """Pure-JAX reference mirroring the PyTorch module (for a sanity check)."""
    w_flip = jnp.transpose(weight[:, :, ::-1, ::-1], (1, 0, 2, 3))  # (Cout, Cin, kh, kw)
    y = jax.lax.conv_general_dilated(
        x_nchw.astype(jnp.float32), w_flip.astype(jnp.float32),
        window_strides=(1, 1), padding=((2, 2), (2, 2)), lhs_dilation=(2, 2),
        dimension_numbers=("NCHW", "OIHW", "NCHW"))
    mean = jnp.mean(y, axis=(2, 3), keepdims=True)
    var = jnp.mean((y - mean) ** 2, axis=(2, 3), keepdims=True)
    y = (y - mean) * jax.lax.rsqrt(var + EPS)
    y = jnp.maximum(y, 0.0)
    return jnp.concatenate([y, skip_nchw.astype(jnp.float32)], axis=1)


if __name__ == "__main__":
    key = jax.random.PRNGKey(0)
    k_x, k_s, k_w = jax.random.split(key, 3)

    N, Cin, Cout, H, W = 2, 8, 4, 16, 16
    Cs = Cout  # typical UNet skip connection has out_channels channels

    x = jax.random.normal(k_x, (N, Cin, H, W), jnp.float32)
    skip = jax.random.normal(k_s, (N, Cs, 2 * H, 2 * W), jnp.float32)
    # ConvTranspose2d weight shape: (in_channels, out_channels, 4, 4)
    weight = 0.1 * jax.random.normal(k_w, (Cin, Cout, K, K), jnp.float32)

    out = jax.block_until_ready(unet_up(x, skip, weight))
    ref = jax.block_until_ready(unet_up_reference(x, skip, weight))

    assert out.shape == (N, Cout + Cs, 2 * H, 2 * W)
    max_err = float(jnp.max(jnp.abs(out - ref)))
    # bf16 MXU inputs + bf16 kernel output vs f32 reference: expect ~1e-2 level error.
    if max_err > 5e-2:
        raise AssertionError(f"Pallas kernel mismatch vs reference: max_err={max_err}")

    print("KERNEL_OK")
</pallas_src>

<mosaic_0001>
module attributes {stable_mosaic.version = 11 : i64} {
  func.func @unet_up_kernel(%arg0: i32, %arg1: i32, %arg2: memref<1x3x8x288xbf16, #tpu.memory_space<vmem>>, %arg3: memref<2x2x4x8x8xbf16, #tpu.memory_space<vmem>>, %arg4: memref<1x2x2x8x256xbf16, #tpu.memory_space<vmem>>, %arg5: memref<2x2x8x256xf32, #tpu.memory_space<vmem>>) attributes {dimension_semantics = [#tpu.dimension_semantics<parallel>, #tpu.dimension_semantics<parallel>], iteration_bounds = array<i64: 2, 1>, scalar_prefetch = 0 : i64, scratch_operands = 1 : i64, tpu.core_type = #tpu.core_type<tc>, window_params = [{transform_indices = @transform_0, window_bounds = array<i64: 1, 3, 8, 288>}, {transform_indices = @transform_1, window_bounds = array<i64: 2, 2, 4, 8, 8>}, {transform_indices = @transform_2, window_bounds = array<i64: 1, 2, 2, 8, 256>}]} {
    %cst = arith.constant 0.000000e+00 : f32
    %0 = vector.broadcast %cst : f32 to vector<8x1xf32>
    %cst_0 = arith.constant 0.000000e+00 : f32
    %1 = vector.broadcast %cst_0 : f32 to vector<8x1xf32>
    %cst_1 = arith.constant 0.000000e+00 : f32
    %2 = vector.broadcast %cst_1 : f32 to vector<8x256xf32>
    %c0 = arith.constant 0 : index
    %c0_2 = arith.constant 0 : index
    %c0_3 = arith.constant 0 : index
    %c0_4 = arith.constant 0 : index
    %3 = vector.load %arg2[%c0, %c0_2, %c0_3, %c0_4] : memref<1x3x8x288xbf16, #tpu.memory_space<vmem>>, vector<1x1x8x256xbf16>
    %4 = vector.shape_cast %3 : vector<1x1x8x256xbf16> to vector<8x256xbf16>
    %c0_5 = arith.constant 0 : index
    %c0_6 = arith.constant 0 : index
    %c0_7 = arith.constant 0 : index
    %c0_8 = arith.constant 0 : index
    %c0_9 = arith.constant 0 : index
    %5 = vector.load %arg3[%c0_5, %c0_6, %c0_7, %c0_8, %c0_9] : memref<2x2x4x8x8xbf16, #tpu.memory_space<vmem>>, vector<1x1x1x8x8xbf16>
    %6 = vector.shape_cast %5 : vector<1x1x1x8x8xbf16> to vector<8x8xbf16>
    %cst_10 = arith.constant dense<0.000000e+00> : vector<8x256xf32>
    %7 = tpu.matmul %6, %4, %cst_10 {dimension_numbers = #tpu.dot_dimension_numbers<[1], [0], [0], [1], [0, 0, 1, 1], [], []>} : vector<8x8xbf16>, vector<8x256xbf16>, vector<8x256xf32> -> vector<8x256xf32>
    %8 = arith.addf %2, %7 : vector<8x256xf32>
    %c0_11 = arith.constant 0 : index
    %c1 = arith.constant 1 : index
    %c0_12 = arith.constant 0 : index
    %c0_13 = arith.constant 0 : index
    %9 = vector.load %arg2[%c0_11, %c1, %c0_12, %c0_13] : memref<1x3x8x288xbf16, #tpu.memory_space<vmem>>, vector<1x1x8x256xbf16>
    %10 = vector.shape_cast %9 : vector<1x1x8x256xbf16> to vector<8x256xbf16>
    %c0_14 = arith.constant 0 : index
    %c0_15 = arith.constant 0 : index
    %c1_16 = arith.constant 1 : index
    %c0_17 = arith.constant 0 : index
    %c0_18 = arith.constant 0 : index
    %11 = vector.load %arg3[%c0_14, %c0_15, %c1_16, %c0_17, %c0_18] : memref<2x2x4x8x8xbf16, #tpu.memory_space<vmem>>, vector<1x1x1x8x8xbf16>
    %12 = vector.shape_cast %11 : vector<1x1x1x8x8xbf16> to vector<8x8xbf16>
    %cst_19 = arith.constant dense<0.000000e+00> : vector<8x256xf32>
    %13 = tpu.matmul %12, %10, %cst_19 {dimension_numbers = #tpu.dot_dimension_numbers<[1], [0], [0], [1], [0, 0, 1, 1], [], []>} : vector<8x8xbf16>, vector<8x256xbf16>, vector<8x256xf32> -> vector<8x256xf32>
    %14 = arith.addf %8, %13 : vector<8x256xf32>
    %c0_20 = arith.constant 0 : index
    %c0_21 = arith.constant 0 : index
    %c0_22 = arith.constant 0 : index
    %c16 = arith.constant 16 : index
    %15 = vector.load %arg2[%c0_20, %c0_21, %c0_22, %c16] : memref<1x3x8x288xbf16, #tpu.memory_space<vmem>>, vector<1x1x8x256xbf16>
    %16 = vector.shape_cast %15 : vector<1x1x8x256xbf16> to vector<8x256xbf16>
    %c0_23 = arith.constant 0 : index
    %c0_24 = arith.constant 0 : index
    %c2 = arith.constant 2 : index
    %c0_25 = arith.constant 0 : index
    %c0_26 = arith.constant 0 : index
    %17 = vector.load %arg3[%c0_23, %c0_24, %c2, %c0_25, %c0_26] : memref<2x2x4x8x8xbf16, #tpu.memory_space<vmem>>, vector<1x1x1x8x8xbf16>
    %18 = vector.shape_cast %17 : vector<1x1x1x8x8xbf16> to vector<8x8xbf16>
    %cst_27 = arith.constant dense<0.000000e+00> : vector<8x256xf32>
    %19 = tpu.matmul %18, %16, %cst_27 {dimension_numbers = #tpu.dot_dimension_numbers<[1], [0], [0], [1], [0, 0, 1, 1], [], []>} : vector<8x8xbf16>, vector<8x256xbf16>, vector<8x256xf32> -> vector<8x256xf32>
    %20 = arith.addf %14, %19 : vector<8x256xf32>
    %c0_28 = arith.constant 0 : index
    %c1_29 = arith.constant 1 : index
    %c0_30 = arith.constant 0 : index
    %c16_31 = arith.constant 16 : index
    %21 = vector.load %arg2[%c0_28, %c1_29, %c0_30, %c16_31] : memref<1x3x8x288xbf16, #tpu.memory_space<vmem>>, vector<1x1x8x256xbf16>
    %22 = vector.shape_cast %21 : vector<1x1x8x256xbf16> to vector<8x256xbf16>
    %c0_32 = arith.constant 0 : index
    %c0_33 = arith.constant 0 : index
    %c3 = arith.constant 3 : index
    %c0_34 = arith.constant 0 : index
    %c0_35 = arith.constant 0 : index
    %23 = vector.load %arg3[%c0_32, %c0_33, %c3, %c0_34, %c0_35] : memref<2x2x4x8x8xbf16, #tpu.memory_space<vmem>>, vector<1x1x1x8x8xbf16>
    %24 = vector.shape_cast %23 : vector<1x1x1x8x8xbf16> to vector<8x8xbf16>
    %cst_36 = arith.constant dense<0.000000e+00> : vector<8x256xf32>
    %25 = tpu.matmul %24, %22, %cst_36 {dimension_numbers = #tpu.dot_dimension_numbers<[1], [0], [0], [1], [0, 0, 1, 1], [], []>} : vector<8x8xbf16>, vector<8x256xbf16>, vector<8x256xf32> -> vector<8x256xf32>
    %26 = arith.addf %20, %25 : vector<8x256xf32>
    %c0_37 = arith.constant 0 : index
    %c0_38 = arith.constant 0 : index
    %c0_39 = arith.constant 0 : index
    %c0_40 = arith.constant 0 : index
    %27 = vector.load %arg5[%c0_37, %c0_38, %c0_39, %c0_40] : memref<2x2x8x256xf32, #tpu.memory_space<vmem>>, vector<1x1x8x256xf32>
    %28 = vector.shape_cast %27 : vector<1x1x8x256xf32> to vector<8x256xf32>
    %29 = vector.shape_cast %26 : vector<8x256xf32> to vector<1x1x8x256xf32>
    tpu.vector_store %arg5[%c0_37, %c0_38, %c0_39, %c0_40], %29 {strides = array<i32>} : memref<2x2x8x256xf32, #tpu.memory_space<vmem>>, vector<1x1x8x256xf32>,
    %cst_41 = arith.constant dense<0.000000e+00> : vector<8xf32>
    %30 = vector.multi_reduction <add>, %26, %cst_41 [1] : vector<8x256xf32> to vector<8xf32>
    %31 = vector.shape_cast %30 : vector<8xf32> to vector<8x1xf32>
    %32 = arith.addf %0, %31 : vector<8x1xf32>
    %33 = arith.mulf %26, %26 : vector<8x256xf32>
    %cst_42 = arith.constant dense<0.000000e+00> : vector<8xf32>
    %34 = vector.multi_reduction <add>, %33, %cst_42 [1] : vector<8x256xf32> to vector<8xf32>
    %35 = vector.shape_cast %34 : vector<8xf32> to vector<8x1xf32>
    %36 = arith.addf %1, %35 : vector<8x1xf32>
    %cst_43 = arith.constant 0.000000e+00 : f32
    %37 = vector.broadcast %cst_43 : f32 to vector<8x256xf32>
    %c0_44 = arith.constant 0 : index
    %c1_45 = arith.constant 1 : index
    %c0_46 = arith.constant 0 : index
    %c0_47 = arith.constant 0 : index
    %38 = vector.load %arg2[%c0_44, %c1_45, %c0_46, %c0_47] : memref<1x3x8x288xbf16, #tpu.memory_space<vmem>>, vector<1x1x8x256xbf16>
    %39 = vector.shape_cast %38 : vector<1x1x8x256xbf16> to vector<8x256xbf16>
    %c0_48 = arith.constant 0 : index
    %c1_49 = arith.constant 1 : index
    %c0_50 = arith.constant 0 : index
    %c0_51 = arith.constant 0 : index
    %c0_52 = arith.constant 0 : index
    %40 = vector.load %arg3[%c0_48, %c1_49, %c0_50, %c0_51, %c0_52] : memref<2x2x4x8x8xbf16, #tpu.memory_space<vmem>>, vector<1x1x1x8x8xbf16>
    %41 = vector.shape_cast %40 : vector<1x1x1x8x8xbf16> to vector<8x8xbf16>
    %cst_53 = arith.constant dense<0.000000e+00> : vector<8x256xf32>
    %42 = tpu.matmul %41, %39, %cst_53 {dimension_numbers = #tpu.dot_dimension_numbers<[1], [0], [0], [1], [0, 0, 1, 1], [], []>} : vector<8x8xbf16>, vector<8x256xbf16>, vector<8x256xf32> -> vector<8x256xf32>
    %43 = arith.addf %37, %42 : vector<8x256xf32>
    %c0_54 = arith.constant 0 : index
    %c2_55 = arith.constant 2 : index
    %c0_56 = arith.constant 0 : index
    %c0_57 = arith.constant 0 : index
    %44 = vector.load %arg2[%c0_54, %c2_55, %c0_56, %c0_57] : memref<1x3x8x288xbf16, #tpu.memory_space<vmem>>, vector<1x1x8x256xbf16>
    %45 = vector.shape_cast %44 : vector<1x1x8x256xbf16> to vector<8x256xbf16>
    %c0_58 = arith.constant 0 : index
    %c1_59 = arith.constant 1 : index
    %c1_60 = arith.constant 1 : index
    %c0_61 = arith.constant 0 : index
    %c0_62 = arith.constant 0 : index
    %46 = vector.load %arg3[%c0_58, %c1_59, %c1_60, %c0_61, %c0_62] : memref<2x2x4x8x8xbf16, #tpu.memory_space<vmem>>, vector<1x1x1x8x8xbf16>
    %47 = vector.shape_cast %46 : vector<1x1x1x8x8xbf16> to vector<8x8xbf16>
    %cst_63 = arith.constant dense<0.000000e+00> : vector<8x256xf32>
    %48 = tpu.matmul %47, %45, %cst_63 {dimension_numbers = #tpu.dot_dimension_numbers<[1], [0], [0], [1], [0, 0, 1, 1], [], []>} : vector<8x8xbf16>, vector<8x256xbf16>, vector<8x256xf32> -> vector<8x256xf32>
    %49 = arith.addf %43, %48 : vector<8x256xf32>
    %c0_64 = arith.constant 0 : index
    %c1_65 = arith.constant 1 : index
    %c0_66 = arith.constant 0 : index
    %c16_67 = arith.constant 16 : index
    %50 = vector.load %arg2[%c0_64, %c1_65, %c0_66, %c16_67] : memref<1x3x8x288xbf16, #tpu.memory_space<vmem>>, vector<1x1x8x256xbf16>
    %51 = vector.shape_cast %50 : vector<1x1x8x256xbf16> to vector<8x256xbf16>
    %c0_68 = arith.constant 0 : index
    %c1_69 = arith.constant 1 : index
    %c2_70 = arith.constant 2 : index
    %c0_71 = arith.constant 0 : index
    %c0_72 = arith.constant 0 : index
    %52 = vector.load %arg3[%c0_68, %c1_69, %c2_70, %c0_71, %c0_72] : memref<2x2x4x8x8xbf16, #tpu.memory_space<vmem>>, vector<1x1x1x8x8xbf16>
    %53 = vector.shape_cast %52 : vector<1x1x1x8x8xbf16> to vector<8x8xbf16>
    %cst_73 = arith.constant dense<0.000000e+00> : vector<8x256xf32>
    %54 = tpu.matmul %53, %51, %cst_73 {dimension_numbers = #tpu.dot_dimension_numbers<[1], [0], [0], [1], [0, 0, 1, 1], [], []>} : vector<8x8xbf16>, vector<8x256xbf16>, vector<8x256xf32> -> vector<8x256xf32>
    %55 = arith.addf %49, %54 : vector<8x256xf32>
    %c0_74 = arith.constant 0 : index
    %c2_75 = arith.constant 2 : index
    %c0_76 = arith.constant 0 : index
    %c16_77 = arith.constant 16 : index
    %56 = vector.load %arg2[%c0_74, %c2_75, %c0_76, %c16_77] : memref<1x3x8x288xbf16, #tpu.memory_space<vmem>>, vector<1x1x8x256xbf16>
    %57 = vector.shape_cast %56 : vector<1x1x8x256xbf16> to vector<8x256xbf16>
    %c0_78 = arith.constant 0 : index
    %c1_79 = arith.constant 1 : index
    %c3_80 = arith.constant 3 : index
    %c0_81 = arith.constant 0 : index
    %c0_82 = arith.constant 0 : index
    %58 = vector.load %arg3[%c0_78, %c1_79, %c3_80, %c0_81, %c0_82] : memref<2x2x4x8x8xbf16, #tpu.memory_space<vmem>>, vector<1x1x1x8x8xbf16>
    %59 = vector.shape_cast %58 : vector<1x1x1x8x8xbf16> to vector<8x8xbf16>
    %cst_83 = arith.constant dense<0.000000e+00> : vector<8x256xf32>
    %60 = tpu.matmul %59, %57, %cst_83 {dimension_numbers = #tpu.dot_dimension_numbers<[1], [0], [0], [1], [0, 0, 1, 1], [], []>} : vector<8x8xbf16>, vector<8x256xbf16>, vector<8x256xf32> -> vector<8x256xf32>
    %61 = arith.addf %55, %60 : vector<8x256xf32>
    %c0_84 = arith.constant 0 : index
    %c1_85 = arith.constant 1 : index
    %c0_86 = arith.constant 0 : index
    %c0_87 = arith.constant 0 : index
    %62 = vector.load %arg5[%c0_84, %c1_85, %c0_86, %c0_87] : memref<2x2x8x256xf32, #tpu.memory_space<vmem>>, vector<1x1x8x256xf32>
    %63 = vector.shape_cast %62 : vector<1x1x8x256xf32> to vector<8x256xf32>
    %64 = vector.shape_cast %61 : vector<8x256xf32> to vector<1x1x8x256xf32>
    tpu.vector_store %arg5[%c0_84, %c1_85, %c0_86, %c0_87], %64 {strides = array<i32>} : memref<2x2x8x256xf32, #tpu.memory_space<vmem>>, vector<1x1x8x256xf32>,
    %cst_88 = arith.constant dense<0.000000e+00> : vector<8xf32>
    %65 = vector.multi_reduction <add>, %61, %cst_88 [1] : vector<8x256xf32> to vector<8xf32>
    %66 = vector.shape_cast %65 : vector<8xf32> to vector<8x1xf32>
    %67 = arith.addf %32, %66 : vector<8x1xf32>
    %68 = arith.mulf %61, %61 : vector<8x256xf32>
    %cst_89 = arith.constant dense<0.000000e+00> : vector<8xf32>
    %69 = vector.multi_reduction <add>, %68, %cst_89 [1] : vector<8x256xf32> to vector<8xf32>
    %70 = vector.shape_cast %69 : vector<8xf32> to vector<8x1xf32>
    %71 = arith.addf %36, %70 : vector<8x1xf32>
    %cst_90 = arith.constant 0.000000e+00 : f32
    %72 = vector.broadcast %cst_90 : f32 to vector<8x256xf32>
    %c0_91 = arith.constant 0 : index
    %c0_92 = arith.constant 0 : index
    %c0_93 = arith.constant 0 : index
    %c16_94 = arith.constant 16 : index
    %73 = vector.load %arg2[%c0_91, %c0_92, %c0_93, %c16_94] : memref<1x3x8x288xbf16, #tpu.memory_space<vmem>>, vector<1x1x8x256xbf16>
    %74 = vector.shape_cast %73 : vector<1x1x8x256xbf16> to vector<8x256xbf16>
    %c1_95 = arith.constant 1 : index
    %c0_96 = arith.constant 0 : index
    %c0_97 = arith.constant 0 : index
    %c0_98 = arith.constant 0 : index
    %c0_99 = arith.constant 0 : index
    %75 = vector.load %arg3[%c1_95, %c0_96, %c0_97, %c0_98, %c0_99] : memref<2x2x4x8x8xbf16, #tpu.memory_space<vmem>>, vector<1x1x1x8x8xbf16>
    %76 = vector.shape_cast %75 : vector<1x1x1x8x8xbf16> to vector<8x8xbf16>
    %cst_100 = arith.constant dense<0.000000e+00> : vector<8x256xf32>
    %77 = tpu.matmul %76, %74, %cst_100 {dimension_numbers = #tpu.dot_dimension_numbers<[1], [0], [0], [1], [0, 0, 1, 1], [], []>} : vector<8x8xbf16>, vector<8x256xbf16>, vector<8x256xf32> -> vector<8x256xf32>
    %78 = arith.addf %72, %77 : vector<8x256xf32>
    %c0_101 = arith.constant 0 : index
    %c1_102 = arith.constant 1 : index
    %c0_103 = arith.constant 0 : index
    %c16_104 = arith.constant 16 : index
    %79 = vector.load %arg2[%c0_101, %c1_102, %c0_103, %c16_104] : memref<1x3x8x288xbf16, #tpu.memory_space<vmem>>, vector<1x1x8x256xbf16>
    %80 = vector.shape_cast %79 : vector<1x1x8x256xbf16> to vector<8x256xbf16>
    %c1_105 = arith.constant 1 : index
    %c0_106 = arith.constant 0 : index
    %c1_107 = arith.constant 1 : index
    %c0_108 = arith.constant 0 : index
    %c0_109 = arith.constant 0 : index
    %81 = vector.load %arg3[%c1_105, %c0_106, %c1_107, %c0_108, %c0_109] : memref<2x2x4x8x8xbf16, #tpu.memory_space<vmem>>, vector<1x1x1x8x8xbf16>
    %82 = vector.shape_cast %81 : vector<1x1x1x8x8xbf16> to vector<8x8xbf16>
    %cst_110 = arith.constant dense<0.000000e+00> : vector<8x256xf32>
    %83 = tpu.matmul %82, %80, %cst_110 {dimension_numbers = #tpu.dot_dimension_numbers<[1], [0], [0], [1], [0, 0, 1, 1], [], []>} : vector<8x8xbf16>, vector<8x256xbf16>, vector<8x256xf32> -> vector<8x256xf32>
    %84 = arith.addf %78, %83 : vector<8x256xf32>
    %c0_111 = arith.constant 0 : index
    %c0_112 = arith.constant 0 : index
    %c0_113 = arith.constant 0 : index
    %c32 = arith.constant 32 : index
    %85 = vector.load %arg2[%c0_111, %c0_112, %c0_113, %c32] : memref<1x3x8x288xbf16, #tpu.memory_space<vmem>>, vector<1x1x8x256xbf16>
    %86 = vector.shape_cast %85 : vector<1x1x8x256xbf16> to vector<8x256xbf16>
    %c1_114 = arith.constant 1 : index
    %c0_115 = arith.constant 0 : index
    %c2_116 = arith.constant 2 : index
    %c0_117 = arith.constant 0 : index
    %c0_118 = arith.constant 0 : index
    %87 = vector.load %arg3[%c1_114, %c0_115, %c2_116, %c0_117, %c0_118] : memref<2x2x4x8x8xbf16, #tpu.memory_space<vmem>>, vector<1x1x1x8x8xbf16>
    %88 = vector.shape_cast %87 : vector<1x1x1x8x8xbf16> to vector<8x8xbf16>
    %cst_119 = arith.constant dense<0.000000e+00> : vector<8x256xf32>
    %89 = tpu.matmul %88, %86, %cst_119 {dimension_numbers = #tpu.dot_dimension_numbers<[1], [0], [0], [1], [0, 0, 1, 1], [], []>} : vector<8x8xbf16>, vector<8x256xbf16>, vector<8x256xf32> -> vector<8x256xf32>
    %90 = arith.addf %84, %89 : vector<8x256xf32>
    %c0_120 = arith.constant 0 : index
    %c1_121 = arith.constant 1 : index
    %c0_122 = arith.constant 0 : index
    %c32_123 = arith.constant 32 : index
    %91 = vector.load %arg2[%c0_120, %c1_121, %c0_122, %c32_123] : memref<1x3x8x288xbf16, #tpu.memory_space<vmem>>, vector<1x1x8x256xbf16>
    %92 = vector.shape_cast %91 : vector<1x1x8x256xbf16> to vector<8x256xbf16>
    %c1_124 = arith.constant 1 : index
    %c0_125 = arith.constant 0 : index
    %c3_126 = arith.constant 3 : index
    %c0_127 = arith.constant 0 : index
    %c0_128 = arith.constant 0 : index
    %93 = vector.load %arg3[%c1_124, %c0_125, %c3_126, %c0_127, %c0_128] : memref<2x2x4x8x8xbf16, #tpu.memory_space<vmem>>, vector<1x1x1x8x8xbf16>
    %94 = vector.shape_cast %93 : vector<1x1x1x8x8xbf16> to vector<8x8xbf16>
    %cst_129 = arith.constant dense<0.000000e+00> : vector<8x256xf32>
    %95 = tpu.matmul %94, %92, %cst_129 {dimension_numbers = #tpu.dot_dimension_numbers<[1], [0], [0], [1], [0, 0, 1, 1], [], []>} : vector<8x8xbf16>, vector<8x256xbf16>, vector<8x256xf32> -> vector<8x256xf32>
    %96 = arith.addf %90, %95 : vector<8x256xf32>
    %c1_130 = arith.constant 1 : index
    %c0_131 = arith.constant 0 : index
    %c0_132 = arith.constant 0 : index
    %c0_133 = arith.constant 0 : index
    %97 = vector.load %arg5[%c1_130, %c0_131, %c0_132, %c0_133] : memref<2x2x8x256xf32, #tpu.memory_space<vmem>>, vector<1x1x8x256xf32>
    %98 = vector.shape_cast %97 : vector<1x1x8x256xf32> to vector<8x256xf32>
    %99 = vector.shape_cast %96 : vector<8x256xf32> to vector<1x1x8x256xf32>
    tpu.vector_store %arg5[%c1_130, %c0_131, %c0_132, %c0_133], %99 {strides = array<i32>} : memref<2x2x8x256xf32, #tpu.memory_space<vmem>>, vector<1x1x8x256xf32>,
    %cst_134 = arith.constant dense<0.000000e+00> : vector<8xf32>
    %100 = vector.multi_reduction <add>, %96, %cst_134 [1] : vector<8x256xf32> to vector<8xf32>
    %101 = vector.shape_cast %100 : vector<8xf32> to vector<8x1xf32>
    %102 = arith.addf %67, %101 : vector<8x1xf32>
    %103 = arith.mulf %96, %96 : vector<8x256xf32>
    %cst_135 = arith.constant dense<0.000000e+00> : vector<8xf32>
    %104 = vector.multi_reduction <add>, %103, %cst_135 [1] : vector<8x256xf32> to vector<8xf32>
    %105 = vector.shape_cast %104 : vector<8xf32> to vector<8x1xf32>
    %106 = arith.addf %71, %105 : vector<8x1xf32>
    %cst_136 = arith.constant 0.000000e+00 : f32
    %107 = vector.broadcast %cst_136 : f32 to vector<8x256xf32>
    %c0_137 = arith.constant 0 : index
    %c1_138 = arith.constant 1 : index
    %c0_139 = arith.constant 0 : index
    %c16_140 = arith.constant 16 : index
    %108 = vector.load %arg2[%c0_137, %c1_138, %c0_139, %c16_140] : memref<1x3x8x288xbf16, #tpu.memory_space<vmem>>, vector<1x1x8x256xbf16>
    %109 = vector.shape_cast %108 : vector<1x1x8x256xbf16> to vector<8x256xbf16>
    %c1_141 = arith.constant 1 : index
    %c1_142 = arith.constant 1 : index
    %c0_143 = arith.constant 0 : index
    %c0_144 = arith.constant 0 : index
    %c0_145 = arith.constant 0 : index
    %110 = vector.load %arg3[%c1_141, %c1_142, %c0_143, %c0_144, %c0_145] : memref<2x2x4x8x8xbf16, #tpu.memory_space<vmem>>, vector<1x1x1x8x8xbf16>
    %111 = vector.shape_cast %110 : vector<1x1x1x8x8xbf16> to vector<8x8xbf16>
    %cst_146 = arith.constant dense<0.000000e+00> : vector<8x256xf32>
    %112 = tpu.matmul %111, %109, %cst_146 {dimension_numbers = #tpu.dot_dimension_numbers<[1], [0], [0], [1], [0, 0, 1, 1], [], []>} : vector<8x8xbf16>, vector<8x256xbf16>, vector<8x256xf32> -> vector<8x256xf32>
    %113 = arith.addf %107, %112 : vector<8x256xf32>
    %c0_147 = arith.constant 0 : index
    %c2_148 = arith.constant 2 : index
    %c0_149 = arith.constant 0 : index
    %c16_150 = arith.constant 16 : index
    %114 = vector.load %arg2[%c0_147, %c2_148, %c0_149, %c16_150] : memref<1x3x8x288xbf16, #tpu.memory_space<vmem>>, vector<1x1x8x256xbf16>
    %115 = vector.shape_cast %114 : vector<1x1x8x256xbf16> to vector<8x256xbf16>
    %c1_151 = arith.constant 1 : index
    %c1_152 = arith.constant 1 : index
    %c1_153 = arith.constant 1 : index
    %c0_154 = arith.constant 0 : index
    %c0_155 = arith.constant 0 : index
    %116 = vector.load %arg3[%c1_151, %c1_152, %c1_153, %c0_154, %c0_155] : memref<2x2x4x8x8xbf16, #tpu.memory_space<vmem>>, vector<1x1x1x8x8xbf16>
    %117 = vector.shape_cast %116 : vector<1x1x1x8x8xbf16> to vector<8x8xbf16>
    %cst_156 = arith.constant dense<0.000000e+00> : vector<8x256xf32>
    %118 = tpu.matmul %117, %115, %cst_156 {dimension_numbers = #tpu.dot_dimension_numbers<[1], [0], [0], [1], [0, 0, 1, 1], [], []>} : vector<8x8xbf16>, vector<8x256xbf16>, vector<8x256xf32> -> vector<8x256xf32>
    %119 = arith.addf %113, %118 : vector<8x256xf32>
    %c0_157 = arith.constant 0 : index
    %c1_158 = arith.constant 1 : index
    %c0_159 = arith.constant 0 : index
    %c32_160 = arith.constant 32 : index
    %120 = vector.load %arg2[%c0_157, %c1_158, %c0_159, %c32_160] : memref<1x3x8x288xbf16, #tpu.memory_space<vmem>>, vector<1x1x8x256xbf16>
    %121 = vector.shape_cast %120 : vector<1x1x8x256xbf16> to vector<8x256xbf16>
    %c1_161 = arith.constant 1 : index
    %c1_162 = arith.constant 1 : index
    %c2_163 = arith.constant 2 : index
    %c0_164 = arith.constant 0 : index
    %c0_165 = arith.constant 0 : index
    %122 = vector.load %arg3[%c1_161, %c1_162, %c2_163, %c0_164, %c0_165] : memref<2x2x4x8x8xbf16, #tpu.memory_space<vmem>>, vector<1x1x1x8x8xbf16>
    %123 = vector.shape_cast %122 : vector<1x1x1x8x8xbf16> to vector<8x8xbf16>
    %cst_166 = arith.constant dense<0.000000e+00> : vector<8x256xf32>
    %124 = tpu.matmul %123, %121, %cst_166 {dimension_numbers = #tpu.dot_dimension_numbers<[1], [0], [0], [1], [0, 0, 1, 1], [], []>} : vector<8x8xbf16>, vector<8x256xbf16>, vector<8x256xf32> -> vector<8x256xf32>
    %125 = arith.addf %119, %124 : vector<8x256xf32>
    %c0_167 = arith.constant 0 : index
    %c2_168 = arith.constant 2 : index
    %c0_169 = arith.constant 0 : index
    %c32_170 = arith.constant 32 : index
    %126 = vector.load %arg2[%c0_167, %c2_168, %c0_169, %c32_170] : memref<1x3x8x288xbf16, #tpu.memory_space<vmem>>, vector<1x1x8x256xbf16>
    %127 = vector.shape_cast %126 : vector<1x1x8x256xbf16> to vector<8x256xbf16>
    %c1_171 = arith.constant 1 : index
    %c1_172 = arith.constant 1 : index
    %c3_173 = arith.constant 3 : index
    %c0_174 = arith.constant 0 : index
    %c0_175 = arith.constant 0 : index
    %128 = vector.load %arg3[%c1_171, %c1_172, %c3_173, %c0_174, %c0_175] : memref<2x2x4x8x8xbf16, #tpu.memory_space<vmem>>, vector<1x1x1x8x8xbf16>
    %129 = vector.shape_cast %128 : vector<1x1x1x8x8xbf16> to vector<8x8xbf16>
    %cst_176 = arith.constant dense<0.000000e+00> : vector<8x256xf32>
    %130 = tpu.matmul %129, %127, %cst_176 {dimension_numbers = #tpu.dot_dimension_numbers<[1], [0], [0], [1], [0, 0, 1, 1], [], []>} : vector<8x8xbf16>, vector<8x256xbf16>, vector<8x256xf32> -> vector<8x256xf32>
    %131 = arith.addf %125, %130 : vector<8x256xf32>
    %c1_177 = arith.constant 1 : index
    %c1_178 = arith.constant 1 : index
    %c0_179 = arith.constant 0 : index
    %c0_180 = arith.constant 0 : index
    %132 = vector.load %arg5[%c1_177, %c1_178, %c0_179, %c0_180] : memref<2x2x8x256xf32, #tpu.memory_space<vmem>>, vector<1x1x8x256xf32>
    %133 = vector.shape_cast %132 : vector<1x1x8x256xf32> to vector<8x256xf32>
    %134 = vector.shape_cast %131 : vector<8x256xf32> to vector<1x1x8x256xf32>
    tpu.vector_store %arg5[%c1_177, %c1_178, %c0_179, %c0_180], %134 {strides = array<i32>} : memref<2x2x8x256xf32, #tpu.memory_space<vmem>>, vector<1x1x8x256xf32>,
    %cst_181 = arith.constant dense<0.000000e+00> : vector<8xf32>
    %135 = vector.multi_reduction <add>, %131, %cst_181 [1] : vector<8x256xf32> to vector<8xf32>
    %136 = vector.shape_cast %135 : vector<8xf32> to vector<8x1xf32>
    %137 = arith.addf %102, %136 : vector<8x1xf32>
    %138 = arith.mulf %131, %131 : vector<8x256xf32>
    %cst_182 = arith.constant dense<0.000000e+00> : vector<8xf32>
    %139 = vector.multi_reduction <add>, %138, %cst_182 [1] : vector<8x256xf32> to vector<8xf32>
    %140 = vector.shape_cast %139 : vector<8xf32> to vector<8x1xf32>
    %141 = arith.addf %106, %140 : vector<8x1xf32>
    %cst_183 = arith.constant 9.765625E-4 : f32
    %142 = vector.broadcast %cst_183 : f32 to vector<8x1xf32>
    %143 = arith.mulf %137, %142 : vector<8x1xf32>
    %cst_184 = arith.constant 9.765625E-4 : f32
    %144 = vector.broadcast %cst_184 : f32 to vector<8x1xf32>
    %145 = arith.mulf %141, %144 : vector<8x1xf32>
    %146 = arith.mulf %143, %143 : vector<8x1xf32>
    %147 = arith.subf %145, %146 : vector<8x1xf32>
    %cst_185 = arith.constant 0.000000e+00 : f32
    %148 = vector.broadcast %cst_185 : f32 to vector<8x1xf32>
    %149 = arith.maximumf %147, %148 : vector<8x1xf32>
    %cst_186 = arith.constant 9.99999974E-6 : f32
    %150 = vector.broadcast %cst_186 : f32 to vector<8x1xf32>
    %151 = arith.addf %149, %150 : vector<8x1xf32>
    %152 = math.rsqrt %151 : vector<8x1xf32>
    %c0_187 = arith.constant 0 : index
    %c0_188 = arith.constant 0 : index
    %c0_189 = arith.constant 0 : index
    %c0_190 = arith.constant 0 : index
    %153 = vector.load %arg5[%c0_187, %c0_188, %c0_189, %c0_190] : memref<2x2x8x256xf32, #tpu.memory_space<vmem>>, vector<1x1x8x256xf32>
    %154 = vector.shape_cast %153 : vector<1x1x8x256xf32> to vector<8x256xf32>
    %155 = vector.broadcast %143 : vector<8x1xf32> to vector<8x256xf32>
    %156 = arith.subf %154, %155 : vector<8x256xf32>
    %157 = vector.broadcast %152 : vector<8x1xf32> to vector<8x256xf32>
    %158 = arith.mulf %156, %157 : vector<8x256xf32>
    %cst_191 = arith.constant 0.000000e+00 : f32
    %159 = vector.broadcast %cst_191 : f32 to vector<8x256xf32>
    %160 = arith.maximumf %158, %159 : vector<8x256xf32>
    %161 = arith.truncf %160 : vector<8x256xf32> to vector<8x256xbf16>
    %c0_192 = arith.constant 0 : index
    %c0_193 = arith.constant 0 : index
    %c0_194 = arith.constant 0 : index
    %c0_195 = arith.constant 0 : index
    %c0_196 = arith.constant 0 : index
    %162 = vector.load %arg4[%c0_192, %c0_193, %c0_194, %c0_195, %c0_196] : memref<1x2x2x8x256xbf16, #tpu.memory_space<vmem>>, vector<1x1x1x8x256xbf16>
    %163 = vector.shape_cast %162 : vector<1x1x1x8x256xbf16> to vector<8x256xbf16>
    %164 = vector.shape_cast %161 : vector<8x256xbf16> to vector<1x1x1x8x256xbf16>
    tpu.vector_store %arg4[%c0_192, %c0_193, %c0_194, %c0_195, %c0_196], %164 {strides = array<i32>} : memref<1x2x2x8x256xbf16, #tpu.memory_space<vmem>>, vector<1x1x1x8x256xbf16>,
    %c0_197 = arith.constant 0 : index
    %c1_198 = arith.constant 1 : index
    %c0_199 = arith.constant 0 : index
    %c0_200 = arith.constant 0 : index
    %165 = vector.load %arg5[%c0_197, %c1_198, %c0_199, %c0_200] : memref<2x2x8x256xf32, #tpu.memory_space<vmem>>, vector<1x1x8x256xf32>
    %166 = vector.shape_cast %165 : vector<1x1x8x256xf32> to vector<8x256xf32>
    %167 = vector.broadcast %143 : vector<8x1xf32> to vector<8x256xf32>
    %168 = arith.subf %166, %167 : vector<8x256xf32>
    %169 = vector.broadcast %152 : vector<8x1xf32> to vector<8x256xf32>
    %170 = arith.mulf %168, %169 : vector<8x256xf32>
    %cst_201 = arith.constant 0.000000e+00 : f32
    %171 = vector.broadcast %cst_201 : f32 to vector<8x256xf32>
    %172 = arith.maximumf %170, %171 : vector<8x256xf32>
    %173 = arith.truncf %172 : vector<8x256xf32> to vector<8x256xbf16>
    %c0_202 = arith.constant 0 : index
    %c0_203 = arith.constant 0 : index
    %c1_204 = arith.constant 1 : index
    %c0_205 = arith.constant 0 : index
    %c0_206 = arith.constant 0 : index
    %174 = vector.load %arg4[%c0_202, %c0_203, %c1_204, %c0_205, %c0_206] : memref<1x2x2x8x256xbf16, #tpu.memory_space<vmem>>, vector<1x1x1x8x256xbf16>
    %175 = vector.shape_cast %174 : vector<1x1x1x8x256xbf16> to vector<8x256xbf16>
    %176 = vector.shape_cast %173 : vector<8x256xbf16> to vector<1x1x1x8x256xbf16>
    tpu.vector_store %arg4[%c0_202, %c0_203, %c1_204, %c0_205, %c0_206], %176 {strides = array<i32>} : memref<1x2x2x8x256xbf16, #tpu.memory_space<vmem>>, vector<1x1x1x8x256xbf16>,
    %c1_207 = arith.constant 1 : index
    %c0_208 = arith.constant 0 : index
    %c0_209 = arith.constant 0 : index
    %c0_210 = arith.constant 0 : index
    %177 = vector.load %arg5[%c1_207, %c0_208, %c0_209, %c0_210] : memref<2x2x8x256xf32, #tpu.memory_space<vmem>>, vector<1x1x8x256xf32>
    %178 = vector.shape_cast %177 : vector<1x1x8x256xf32> to vector<8x256xf32>
    %179 = vector.broadcast %143 : vector<8x1xf32> to vector<8x256xf32>
    %180 = arith.subf %178, %179 : vector<8x256xf32>
    %181 = vector.broadcast %152 : vector<8x1xf32> to vector<8x256xf32>
    %182 = arith.mulf %180, %181 : vector<8x256xf32>
    %cst_211 = arith.constant 0.000000e+00 : f32
    %183 = vector.broadcast %cst_211 : f32 to vector<8x256xf32>
    %184 = arith.maximumf %182, %183 : vector<8x256xf32>
    %185 = arith.truncf %184 : vector<8x256xf32> to vector<8x256xbf16>
    %c0_212 = arith.constant 0 : index
    %c1_213 = arith.constant 1 : index
    %c0_214 = arith.constant 0 : index
    %c0_215 = arith.constant 0 : index
    %c0_216 = arith.constant 0 : index
    %186 = vector.load %arg4[%c0_212, %c1_213, %c0_214, %c0_215, %c0_216] : memref<1x2x2x8x256xbf16, #tpu.memory_space<vmem>>, vector<1x1x1x8x256xbf16>
    %187 = vector.shape_cast %186 : vector<1x1x1x8x256xbf16> to vector<8x256xbf16>
    %188 = vector.shape_cast %185 : vector<8x256xbf16> to vector<1x1x1x8x256xbf16>
    tpu.vector_store %arg4[%c0_212, %c1_213, %c0_214, %c0_215, %c0_216], %188 {strides = array<i32>} : memref<1x2x2x8x256xbf16, #tpu.memory_space<vmem>>, vector<1x1x1x8x256xbf16>,
    %c1_217 = arith.constant 1 : index
    %c1_218 = arith.constant 1 : index
    %c0_219 = arith.constant 0 : index
    %c0_220 = arith.constant 0 : index
    %189 = vector.load %arg5[%c1_217, %c1_218, %c0_219, %c0_220] : memref<2x2x8x256xf32, #tpu.memory_space<vmem>>, vector<1x1x8x256xf32>
    %190 = vector.shape_cast %189 : vector<1x1x8x256xf32> to vector<8x256xf32>
    %191 = vector.broadcast %143 : vector<8x1xf32> to vector<8x256xf32>
    %192 = arith.subf %190, %191 : vector<8x256xf32>
    %193 = vector.broadcast %152 : vector<8x1xf32> to vector<8x256xf32>
    %194 = arith.mulf %192, %193 : vector<8x256xf32>
    %cst_221 = arith.constant 0.000000e+00 : f32
    %195 = vector.broadcast %cst_221 : f32 to vector<8x256xf32>
    %196 = arith.maximumf %194, %195 : vector<8x256xf32>
    %197 = arith.truncf %196 : vector<8x256xf32> to vector<8x256xbf16>
    %c0_222 = arith.constant 0 : index
    %c1_223 = arith.constant 1 : index
    %c1_224 = arith.constant 1 : index
    %c0_225 = arith.constant 0 : index
    %c0_226 = arith.constant 0 : index
    %198 = vector.load %arg4[%c0_222, %c1_223, %c1_224, %c0_225, %c0_226] : memref<1x2x2x8x256xbf16, #tpu.memory_space<vmem>>, vector<1x1x1x8x256xbf16>
    %199 = vector.shape_cast %198 : vector<1x1x1x8x256xbf16> to vector<8x256xbf16>
    %200 = vector.shape_cast %197 : vector<8x256xbf16> to vector<1x1x1x8x256xbf16>
    tpu.vector_store %arg4[%c0_222, %c1_223, %c1_224, %c0_225, %c0_226], %200 {strides = array<i32>} : memref<1x2x2x8x256xbf16, #tpu.memory_space<vmem>>, vector<1x1x1x8x256xbf16>,
    return
  }
  func.func @transform_0(%arg0: i32, %arg1: i32) -> (i32, i32, i32, i32) {
    %c0_i32 = arith.constant 0 : i32
    %c0_i32_0 = arith.constant 0 : i32
    %c0_i32_1 = arith.constant 0 : i32
    %c0_i32_2 = arith.constant 0 : i32
    return %arg0, %c0_i32, %c0_i32_0, %c0_i32_1 : i32, i32, i32, i32
  }
  func.func @transform_1(%arg0: i32, %arg1: i32) -> (i32, i32, i32, i32, i32) {
    %c0_i32 = arith.constant 0 : i32
    %c0_i32_0 = arith.constant 0 : i32
    %c0_i32_1 = arith.constant 0 : i32
    %c0_i32_2 = arith.constant 0 : i32
    %c0_i32_3 = arith.constant 0 : i32
    return %c0_i32, %c0_i32_0, %c0_i32_1, %arg1, %c0_i32_2 : i32, i32, i32, i32, i32
  }
  func.func @transform_2(%arg0: i32, %arg1: i32) -> (i32, i32, i32, i32, i32) {
    %c0_i32 = arith.constant 0 : i32
    %c0_i32_0 = arith.constant 0 : i32
    %c0_i32_1 = arith.constant 0 : i32
    %c0_i32_2 = arith.constant 0 : i32
    return %arg0, %c0_i32, %c0_i32_0, %arg1, %c0_i32_1 : i32, i32, i32, i32, i32
  }
}

</mosaic_0001>

<llo_original>
// kernel: tpu_custom_call.1
$region0: #{tpu_custom_call.1}
  #allocation0 [shape = 'u32[]', space=smem, size = 0x4, offset = 0x4, fixed_abs, tag = 'smem constant byte address 0x4 - core index']
  #allocation1 [shape = 'u32[72,128]{1,0:T(1,128)}', space=vmem, size = 0x9000, scoped, tag = 'internal scratch']
  #allocation2 [shape = 'f32[2,2,8,256]{3,2,1,0:T(8,128)}', space=vmem, size = 0x8000, scoped, tag = 'scratch operand']
  %s0 = inlined_call_operand.hbm [shape: bf16[2,3,8,288], index: 0, kind: input, shape index: {}]
  %s1 = inlined_call_operand.hbm [shape: bf16[2,2,4,8,8], index: 1, kind: input, shape index: {}]
  %s2 = inlined_call_operand.hbm [shape: bf16[2,2,2,8,256], index: 2, kind: output, shape index: {}]
  %s3 = sld [smem:[#allocation0]]
  $region49: #{tpu_custom_call.1} parent=0
    _
  %s5 = ssub.s32 1, %s3
  %s6 = scalar_select 0, %s5, %s3
  $region1: #{tpu_custom_call.1} parent=0
    #allocation3 [shape = 'u8[36864]{0}', space=vmem, size = 0x9000, scoped, tag = 'input window, operand 0']
    #allocation4 [shape = 's32[2]{0}', space=sflag, size = 0x8, scoped, tag = 'scoped memory for tpu_custom_call.1']
    #allocation5 [shape = 's32[2]{0}', space=sflag, size = 0x8, scoped, tag = 'scoped memory for tpu_custom_call.1']
    #allocation6 [shape = 'u8[32768]{0}', space=vmem, size = 0x8000, scoped, tag = 'input window, operand 1, single buffered']
    #allocation7 [shape = 's32[1]{0}', space=sflag, size = 0x4, scoped, tag = 'scoped memory for tpu_custom_call.1']
    #allocation8 [shape = 'u8[32768]{0}', space=vmem, size = 0x8000, scoped, tag = 'output window, operand 0']
    %7 = vsyncpa [#allocation4], 0
    %s8 = scalar_lea.sflag [#allocation4], 1
    %9 = vsyncpa %s8, 0
    %10 = vsyncpa [#allocation7], 0
    %11 = vsyncpa [#allocation5], 0
    %s12 = scalar_lea.sflag [#allocation5], 1
    %13 = vsyncpa %s12, 0
    loop: start=0, step=1, limit=4
    $region2: #{tpu_custom_call.1} parent=1 // loop_pre_header
      _
    $region3: #{tpu_custom_call.1} parent=1 // loop_header
      %s15 = sphi 0, %s19
      %p16 = scmp.ge.s32.totalorder %s15, 4
      %s22 = sphi 0, %s34
      %s23 = sphi 0, %s30
      %s24 = sphi 0, %s22
      %s25 = sphi 0, %s23
      %s26 = sphi 0, %s24
      %s27 = sphi 0, %s25
      %s37 = sphi 0, %s39
      %s40 = sphi 0, %s37
      %s41 = sphi 0, %s40
      %s57 = sphi 0, %s41
      %s63 = sphi 0, %s65
      %s66 = sphi 0, %s63
      %s67 = sphi 0, %s66
      %s83 = sphi 0, %s67
      %s91 = sphi 0, %s93
      %s94 = sphi 0, %s91
      %s95 = sphi 0, %s94
      %s111 = sphi 0, %s95
    $region4: #{tpu_custom_call.1} parent=1 // loop_header_branch
      %18 = sbr.rel (%p16) target = $region8
    $region5: #{tpu_custom_call.1} parent=1 // loop_body
      %s20 = ssub.s32 %s15, 1
      %s21 = ssub.s32 %s15, 2
      %s28 = sadd.s32 1, %s23
      %p29 = scmp.ge.s32.totalorder %s28, 1
      %s30 = scalar_select %p29, 0, %s28
      %s31 = sadd.s32 1, %s22
      %s32 = scalar_select %p29, %s31, %s22
      %p33 = scmp.ge.s32.totalorder %s32, 2
      %s34 = scalar_select %p33, 0, %s32
      %s35 = ssub.s32 %s22, %s34
      %p36 = scmp.eq.s32.totalorder %s35, 0
      %s38 = sadd.s32 %s37, 1
      %s39 = scalar_select %p36, %s37, %s38
      %p42 = pneg %p36
      %p43 = scmp.eq.s32.totalorder %s15, 1
      %p44 = por %p42, %p43
      %p45 = scmp.ne.s32.totalorder %s37, %s40
      %p46 = scmp.eq.s32.totalorder %s15, 0
      %p47 = por %p45, %p46
      %p48 = scmp.ne.s32.totalorder %s37, %s40
      %p49 = scmp.eq.s32.totalorder %s20, 1
      %p50 = por %p48, %p49
      %p51 = scmp.ne.s32.totalorder %s40, %s41
      %p52 = scmp.eq.s32.totalorder %s20, 0
      %p53 = por %p51, %p52
      %p54 = scmp.ne.s32.totalorder %s40, %s41
      %p55 = scmp.eq.s32.totalorder %s21, 1
      %p56 = por %p54, %p55
      %p58 = scmp.ne.s32.totalorder %s41, %s57
      %p59 = scmp.eq.s32.totalorder %s21, 0
      %p60 = por %p58, %p59
      %s61 = ssub.s32 %s23, %s30
      %p62 = scmp.eq.s32.totalorder %s61, 0
      %s64 = sadd.s32 %s63, 1
      %s65 = scalar_select %p62, %s63, %s64
      %p68 = pneg %p62
      %p69 = scmp.eq.s32.totalorder %s15, 1
      %p70 = por %p68, %p69
      %p71 = scmp.ne.s32.totalorder %s63, %s66
      %p72 = scmp.eq.s32.totalorder %s15, 0
      %p73 = por %p71, %p72
      %p74 = scmp.ne.s32.totalorder %s63, %s66
      %p75 = scmp.eq.s32.totalorder %s20, 1
      %p76 = por %p74, %p75
      %p77 = scmp.ne.s32.totalorder %s66, %s67
      %p78 = scmp.eq.s32.totalorder %s20, 0
      %p79 = por %p77, %p78
      %p80 = scmp.ne.s32.totalorder %s66, %s67
      %p81 = scmp.eq.s32.totalorder %s21, 1
      %p82 = por %p80, %p81
      %p84 = scmp.ne.s32.totalorder %s67, %s83
      %p85 = scmp.eq.s32.totalorder %s21, 0
      %p86 = por %p84, %p85
      %s87 = ssub.s32 %s22, %s34
      %s88 = ssub.s32 %s23, %s30
      %s89 = sor.u32 %s87, %s88
      %p90 = scmp.eq.s32.totalorder %s89, 0
      %s92 = sadd.s32 %s91, 1
      %s93 = scalar_select %p90, %s91, %s92
      %p96 = pneg %p90
      %p97 = scmp.eq.s32.totalorder %s15, 1
      %p98 = por %p96, %p97
      %p99 = scmp.ne.s32.totalorder %s91, %s94
      %p100 = scmp.eq.s32.totalorder %s15, 0
      %p101 = por %p99, %p100
      %p102 = scmp.ne.s32.totalorder %s91, %s94
      %p103 = scmp.eq.s32.totalorder %s20, 1
      %p104 = por %p102, %p103
      %p105 = scmp.ne.s32.totalorder %s94, %s95
      %p106 = scmp.eq.s32.totalorder %s20, 0
      %p107 = por %p105, %p106
      %p108 = scmp.ne.s32.totalorder %s94, %s95
      %p109 = scmp.eq.s32.totalorder %s21, 1
      %p110 = por %p108, %p109
      %p112 = scmp.ne.s32.totalorder %s95, %s111
      %p113 = scmp.eq.s32.totalorder %s21, 0
      %p114 = por %p112, %p113
      %p115 = scmp.le.s32.totalorder 1, %s15
      %p116 = scmp.lt.s32.totalorder %s15, 3
      %p117 = pnand %p115, %p116
      %p118 = pneg %p117
      // Predicated region
      $region9: #{tpu_custom_call.1} parent=5 // pred_check
        _
      $region10: #{tpu_custom_call.1} parent=5 // pred_check_branch
        %120 = sbr.rel (%p117) target = $region12
      $region11: #{tpu_custom_call.1} parent=5 // pred_region
        %s121 = ssub.s32 %s15, 1
        // Predicated region
        $region13: #{tpu_custom_call.1} parent=11 // pred_check
          %p122 = pneg %p79
        $region14: #{tpu_custom_call.1} parent=11 // pred_check_branch
          %124 = sbr.rel (%p122) target = $region16
        $region15: #{tpu_custom_call.1} parent=11 // pred_region
          %126 = vsyncadd [#allocation7], 0
          %s127 = smul.addr %s25, 4
          %s128 = scalar_lea.hbm %s1, %s127
          %s129 = sshll.u32 %s128, 4
          %s130 = int_to_ptr.hbm [resolvable:$true] %s129
          %s131 = sshll.u32 [#allocation6], 4
          %s132 = int_to_ptr.vmem [resolvable:$true] %s131
          %137 = dma.hbm_to_vmem [thread:$0]  %s130, 1024, %s132, [#allocation7], 64, 64, 4
        $region16: #{tpu_custom_call.1} parent=11 // pred_fallthru
          _
      $region12: #{tpu_custom_call.1} parent=5 // pred_fallthru
        _
      %p138 = scmp.lt.s32.totalorder %s15, 2
      // Predicated region
      $region17: #{tpu_custom_call.1} parent=5 // pred_check
        %p139 = pneg %p138
      $region18: #{tpu_custom_call.1} parent=5 // pred_check_branch
        %141 = sbr.rel (%p139) target = $region20
      $region19: #{tpu_custom_call.1} parent=5 // pred_region
        // Predicated region
        $region21: #{tpu_custom_call.1} parent=19 // pred_check
          %p142 = pneg %p47
        $region22: #{tpu_custom_call.1} parent=19 // pred_check_branch
          %144 = sbr.rel (%p142) target = $region24
        $region23: #{tpu_custom_call.1} parent=19 // pred_region
          %s145 = sand.u32 %s37, 1
          %s146 = scalar_lea.sflag [#allocation4], %s145
          %s147 = sand.u32 %s37, 1
          %s148 = smul.addr %s147, 36
          %s149 = scalar_lea.vmem [#allocation3], %s148
          %151 = vsyncadd %s146, 0
          %s152 = smul.addr %s22, 9
          %s153 = smul.addr %s152, 4
          %s154 = scalar_lea.hbm %s0, %s153
          %s155 = sshll.u32 %s154, 4
          %s156 = int_to_ptr.hbm [resolvable:$true] %s155
          %s157 = sshll.u32 %s149, 4
          %s158 = int_to_ptr.vmem [resolvable:$true] %s157
          %163 = dma.hbm_to_vmem [thread:$0]  %s156, 576, %s158, %s146, 192, 192, 12
        $region24: #{tpu_custom_call.1} parent=19 // pred_fallthru
          _
      $region20: #{tpu_custom_call.1} parent=5 // pred_fallthru
        _
      %p164 = scmp.le.s32.totalorder 1, %s15
      %p165 = scmp.lt.s32.totalorder %s15, 3
      %p166 = pnand %p164, %p165
      %p167 = pneg %p166
      // Predicated region
      $region25: #{tpu_custom_call.1} parent=5 // pred_check
        _
      $region26: #{tpu_custom_call.1} parent=5 // pred_check_branch
        %169 = sbr.rel (%p166) target = $region28
      $region27: #{tpu_custom_call.1} parent=5 // pred_region
        %s170 = ssub.s32 %s15, 1
        %s171 = sand.u32 %s40, 1
        %s172 = scalar_lea.sflag [#allocation4], %s171
        %s173 = sand.u32 %s40, 1
        %s174 = smul.addr %s173, 36
        %s175 = scalar_lea.vmem [#allocation3], %s174
        // Predicated region
        $region29: #{tpu_custom_call.1} parent=27 // pred_check
          %p176 = pneg %p53
        $region30: #{tpu_custom_call.1} parent=27 // pred_check_branch
          %178 = sbr.rel (%p176) target = $region32
        $region31: #{tpu_custom_call.1} parent=27 // pred_region
          %180 = dma.done %s172, 576
        $region32: #{tpu_custom_call.1} parent=27 // pred_fallthru
          _
        // Predicated region
        $region33: #{tpu_custom_call.1} parent=27 // pred_check
          %p181 = pneg %p79
        $region34: #{tpu_custom_call.1} parent=27 // pred_check_branch
          %183 = sbr.rel (%p181) target = $region36
        $region35: #{tpu_custom_call.1} parent=27 // pred_region
          %185 = dma.done [#allocation7], 1024
        $region36: #{tpu_custom_call.1} parent=27 // pred_fallthru
          _
        %s186 = sand.u32 %s40, 1
        %s187 = scalar_lea.sflag [#allocation4], %s186
        %s188 = sand.u32 %s40, 1
        %s189 = smul.addr %s188, 36
        %s190 = scalar_lea.vmem [#allocation3], %s189
        %p191 = pneg %p53
        %p192 = pneg %p50
        %p193 = pneg %p79
        %p194 = pneg %p76
        %p195 = pneg %p107
        %p196 = pneg %p104
        %s197 = sand.u32 %s94, 1
        %s198 = scalar_lea.sflag [#allocation5], %s197
        %s199 = sand.u32 %s94, 1
        %s200 = smul.addr %s199, 32
        %s201 = scalar_lea.vmem [#allocation8], %s200
        %v203 = vld [vmem:[%s175] sm:$0xff]
        %v204 = vld [vmem:[#allocation6] sm:$0xf]
        %s205 = scalar_lea.vmem %s175, 12 [#allocation3]
        %v206 = vld [vmem:[%s205] sm:$0xff]
        %s207 = scalar_lea.vmem [#allocation6], 4
        %v208 = vld [vmem:[%s207] sm:$0xf]
        %v210 = vunpack.c.l.b16 %v206
        %v211 = vunpack.c.h.b16 %v206
        %v212 = vpack.c.b16 %v210, %v210
        %v213 = vpack.c.b16 %v211, %v211
        %vm214 = vcmask 64512
        %v216 = vsel %vm214, %v208, 0
        %vm218 = vcmask 1043456
        %v220 = vsel %vm218, %v212, 0
        %v223 = vsel %vm218, %v213, 0
        %225 = vmatpush.bf16.msra.mxu0 0
        %226 = vmatpush.bf16.msra.mxu0 0
        %227 = vmatpush.bf16.msra.mxu0 0
        %228 = vmatpush.bf16.msra.mxu0 0
        %229 = vmatpush.bf16.msra.mxu0 0
        %230 = vmatpush.bf16.msra.mxu0 0
        %231 = vmatpush.bf16.msra.mxu0 0
        %232 = vmatpush.bf16.msra.mxu0 %v220
        %233 = vmatmul.bf16.gmra.mxu0 %v216
        %v234 = vpop.f32.mrf.mxu0
        %v235 = vadd.f32 0.0, %v234
        %v236 = vpop.f32.mrf.mxu0
        %237 = vdwg.mxu0
        %238 = vmatpush.bf16.msra.mxu0 0
        %239 = vmatpush.bf16.msra.mxu0 0
        %240 = vmatpush.bf16.msra.mxu0 0
        %241 = vmatpush.bf16.msra.mxu0 0
        %242 = vmatpush.bf16.msra.mxu0 0
        %243 = vmatpush.bf16.msra.mxu0 0
        %244 = vmatpush.bf16.msra.mxu0 0
        %245 = vmatpush.bf16.msra.mxu0 %v223
        %246 = vmatmul.bf16.gmra.mxu0 %v216
        %v247 = vpop.f32.mrf.mxu0
        %v248 = vadd.f32 0.0, %v247
        %v249 = vpop.f32.mrf.mxu0
        %250 = vdwg.mxu0
        %v252 = vunpack.c.l.b16 %v203
        %v253 = vunpack.c.h.b16 %v203
        %v254 = vpack.c.b16 %v252, %v252
        %v255 = vpack.c.b16 %v253, %v253
        %v257 = vsel %vm214, %v204, 0
        %v260 = vsel %vm218, %v254, 0
        %v263 = vsel %vm218, %v255, 0
        %265 = vmatpush.bf16.msra.mxu0 0
        %266 = vmatpush.bf16.msra.mxu0 0
        %267 = vmatpush.bf16.msra.mxu0 0
        %268 = vmatpush.bf16.msra.mxu0 0
        %269 = vmatpush.bf16.msra.mxu0 0
        %270 = vmatpush.bf16.msra.mxu0 0
        %271 = vmatpush.bf16.msra.mxu0 0
        %272 = vmatpush.bf16.msra.mxu0 %v260
        %273 = vmatmul.bf16.gmra.mxu0 %v257
        %v274 = vpop.f32.mrf.mxu0
        %v275 = vadd.f32 %v235, %v274
        %v276 = vpop.f32.mrf.mxu0
        %277 = vdwg.mxu0
        %278 = vmatpush.bf16.msra.mxu0 0
        %279 = vmatpush.bf16.msra.mxu0 0
        %280 = vmatpush.bf16.msra.mxu0 0
        %281 = vmatpush.bf16.msra.mxu0 0
        %282 = vmatpush.bf16.msra.mxu0 0
        %283 = vmatpush.bf16.msra.mxu0 0
        %284 = vmatpush.bf16.msra.mxu0 0
        %285 = vmatpush.bf16.msra.mxu0 %v263
        %286 = vmatmul.bf16.gmra.mxu0 %v257
        %v287 = vpop.f32.mrf.mxu0
        %v288 = vadd.f32 %v248, %v287
        %v289 = vpop.f32.mrf.mxu0
        %290 = vdwg.mxu0
        %v291 = vld [vmem:[%s175] sm:$0xff]
        %v292 = vld [vmem:[%s175 + $0x8] sm:$0xf]
        %s293 = scalar_lea.vmem [#allocation6], 8
        %v294 = vld [vmem:[%s293] sm:$0xf]
        %v297 = vunpack.c.l.b16 %v291
        %v298 = vunpack.c.h.b16 %v291
        %v299 = vunpack.c.l.b16 %v292
        %v300 = vpack.c.b16 %v297, %v297
        %v301 = vpack.c.b16 %v298, %v298
        %v302 = vpack.c.b16 %v299, %v299
        %303 = vrot.lane.b32.xlu0 %v300, 112
        %v304 = vpop.permute.xlu0 %303
        %305 = vrot.lane.b32.xlu0 %v301, 112
        %v306 = vpop.permute.xlu0 %305
        %307 = vrot.lane.b32.xlu0 %v302, 112
        %v308 = vpop.permute.xlu0 %307
        %vm309 = vcmask 916480
        %v310 = vsel %vm309, %v304, %v306
        %v311 = vsel %vm309, %v306, %v308
        %v313 = vsel %vm214, %v294, 0
        %v316 = vsel %vm218, %v310, 0
        %v319 = vsel %vm218, %v311, 0
        %321 = vmatpush.bf16.msra.mxu0 0
        %322 = vmatpush.bf16.msra.mxu0 0
        %323 = vmatpush.bf16.msra.mxu0 0
        %324 = vmatpush.bf16.msra.mxu0 0
        %325 = vmatpush.bf16.msra.mxu0 0
        %326 = vmatpush.bf16.msra.mxu0 0
        %327 = vmatpush.bf16.msra.mxu0 0
        %328 = vmatpush.bf16.msra.mxu0 %v316
        %329 = vmatmul.bf16.gmra.mxu0 %v313
        %v330 = vpop.f32.mrf.mxu0
        %v331 = vadd.f32 0.0, %v330
        %v332 = vpop.f32.mrf.mxu0
        %333 = vdwg.mxu0
        %334 = vmatpush.bf16.msra.mxu0 0
        %335 = vmatpush.bf16.msra.mxu0 0
        %336 = vmatpush.bf16.msra.mxu0 0
        %337 = vmatpush.bf16.msra.mxu0 0
        %338 = vmatpush.bf16.msra.mxu0 0
        %339 = vmatpush.bf16.msra.mxu0 0
        %340 = vmatpush.bf16.msra.mxu0 0
        %341 = vmatpush.bf16.msra.mxu0 %v319
        %342 = vmatmul.bf16.gmra.mxu0 %v313
        %v343 = vpop.f32.mrf.mxu0
        %v344 = vadd.f32 0.0, %v343
        %v345 = vpop.f32.mrf.mxu0
        %346 = vdwg.mxu0
        %v347 = vadd.f32 %v275, %v331
        %v348 = vadd.f32 %v288, %v344
        %v349 = vld [vmem:[%s205] sm:$0xff]
        %v350 = vld [vmem:[%s205 + $0x8] sm:$0xf]
        %s351 = scalar_lea.vmem [#allocation6], 12
        %v352 = vld [vmem:[%s351] sm:$0xf]
        %v355 = vunpack.c.l.b16 %v349
        %v356 = vunpack.c.h.b16 %v349
        %v357 = vunpack.c.l.b16 %v350
        %v358 = vpack.c.b16 %v355, %v355
        %v359 = vpack.c.b16 %v356, %v356
        %v360 = vpack.c.b16 %v357, %v357
        %361 = vrot.lane.b32.xlu0 %v358, 112
        %v362 = vpop.permute.xlu0 %361
        %363 = vrot.lane.b32.xlu0 %v359, 112
        %v364 = vpop.permute.xlu0 %363
        %365 = vrot.lane.b32.xlu0 %v360, 112
        %v366 = vpop.permute.xlu0 %365
        %v367 = vsel %vm309, %v362, %v364
        %v368 = vsel %vm309, %v364, %v366
        %v370 = vsel %vm214, %v352, 0
        %v373 = vsel %vm218, %v367, 0
        %v376 = vsel %vm218, %v368, 0
        %378 = vmatpush.bf16.msra.mxu0 0
        %379 = vmatpush.bf16.msra.mxu0 0
        %380 = vmatpush.bf16.msra.mxu0 0
        %381 = vmatpush.bf16.msra.mxu0 0
        %382 = vmatpush.bf16.msra.mxu0 0
        %383 = vmatpush.bf16.msra.mxu0 0
        %384 = vmatpush.bf16.msra.mxu0 0
        %385 = vmatpush.bf16.msra.mxu0 %v373
        %386 = vmatmul.bf16.gmra.mxu0 %v370
        %v387 = vpop.f32.mrf.mxu0
        %v388 = vadd.f32 0.0, %v387
        %v389 = vpop.f32.mrf.mxu0
        %390 = vdwg.mxu0
        %391 = vmatpush.bf16.msra.mxu0 0
        %392 = vmatpush.bf16.msra.mxu0 0
        %393 = vmatpush.bf16.msra.mxu0 0
        %394 = vmatpush.bf16.msra.mxu0 0
        %395 = vmatpush.bf16.msra.mxu0 0
        %396 = vmatpush.bf16.msra.mxu0 0
        %397 = vmatpush.bf16.msra.mxu0 0
        %398 = vmatpush.bf16.msra.mxu0 %v376
        %399 = vmatmul.bf16.gmra.mxu0 %v370
        %v400 = vpop.f32.mrf.mxu0
        %v401 = vadd.f32 0.0, %v400
        %v402 = vpop.f32.mrf.mxu0
        %403 = vdwg.mxu0
        %v404 = vadd.f32 %v347, %v388
        %v405 = vadd.f32 %v348, %v401
        %406 = vst [vmem:[#allocation2] sm:$0xff] %v404
        %407 = vst [vmem:[#allocation2 + $0x8] sm:$0xff] %v405
        %v408 = vadd.f32 %v404, %v405
        %409 = vadd.xlane.f32.xlu0 %v408
        %v410 = vpop.xlane.xlu0 %409
        %v411 = vadd.f32 %v410, 0.0
        %v412 = vmul.f32 %v404, %v404
        %v413 = vmul.f32 %v405, %v405
        %v414 = vadd.f32 %v412, %v413
        %415 = vadd.xlane.f32.xlu0 %v414
        %v416 = vpop.xlane.xlu0 %415
        %v417 = vadd.f32 %v416, 0.0
        %v418 = vld [vmem:[%s205] sm:$0xff]
        %s419 = scalar_lea.vmem [#allocation6], 16
        %v420 = vld [vmem:[%s419] sm:$0xf]
        %s421 = scalar_lea.vmem %s175, 24 [#allocation3]
        %v422 = vld [vmem:[%s421] sm:$0xff]
        %s423 = scalar_lea.vmem [#allocation6], 20
        %v424 = vld [vmem:[%s423] sm:$0xf]
        %v426 = vunpack.c.l.b16 %v422
        %v427 = vunpack.c.h.b16 %v422
        %v428 = vpack.c.b16 %v426, %v426
        %v429 = vpack.c.b16 %v427, %v427
        %v431 = vsel %vm214, %v424, 0
        %v434 = vsel %vm218, %v428, 0
        %v437 = vsel %vm218, %v429, 0
        %439 = vmatpush.bf16.msra.mxu0 0
        %440 = vmatpush.bf16.msra.mxu0 0
        %441 = vmatpush.bf16.msra.mxu0 0
        %442 = vmatpush.bf16.msra.mxu0 0
        %443 = vmatpush.bf16.msra.mxu0 0
        %444 = vmatpush.bf16.msra.mxu0 0
        %445 = vmatpush.bf16.msra.mxu0 0
        %446 = vmatpush.bf16.msra.mxu0 %v434
        %447 = vmatmul.bf16.gmra.mxu0 %v431
        %v448 = vpop.f32.mrf.mxu0
        %v449 = vadd.f32 0.0, %v448
        %v450 = vpop.f32.mrf.mxu0
        %451 = vdwg.mxu0
        %452 = vmatpush.bf16.msra.mxu0 0
        %453 = vmatpush.bf16.msra.mxu0 0
        %454 = vmatpush.bf16.msra.mxu0 0
        %455 = vmatpush.bf16.msra.mxu0 0
        %456 = vmatpush.bf16.msra.mxu0 0
        %457 = vmatpush.bf16.msra.mxu0 0
        %458 = vmatpush.bf16.msra.mxu0 0
        %459 = vmatpush.bf16.msra.mxu0 %v437
        %460 = vmatmul.bf16.gmra.mxu0 %v431
        %v461 = vpop.f32.mrf.mxu0
        %v462 = vadd.f32 0.0, %v461
        %v463 = vpop.f32.mrf.mxu0
        %464 = vdwg.mxu0
        %v466 = vunpack.c.l.b16 %v418
        %v467 = vunpack.c.h.b16 %v418
        %v468 = vpack.c.b16 %v466, %v466
        %v469 = vpack.c.b16 %v467, %v467
        %v471 = vsel %vm214, %v420, 0
        %v474 = vsel %vm218, %v468, 0
        %v477 = vsel %vm218, %v469, 0
        %479 = vmatpush.bf16.msra.mxu0 0
        %480 = vmatpush.bf16.msra.mxu0 0
        %481 = vmatpush.bf16.msra.mxu0 0
        %482 = vmatpush.bf16.msra.mxu0 0
        %483 = vmatpush.bf16.msra.mxu0 0
        %484 = vmatpush.bf16.msra.mxu0 0
        %485 = vmatpush.bf16.msra.mxu0 0
        %486 = vmatpush.bf16.msra.mxu0 %v474
        %487 = vmatmul.bf16.gmra.mxu0 %v471
        %v488 = vpop.f32.mrf.mxu0
        %v489 = vadd.f32 %v449, %v488
        %v490 = vpop.f32.mrf.mxu0
        %491 = vdwg.mxu0
        %492 = vmatpush.bf16.msra.mxu0 0
        %493 = vmatpush.bf16.msra.mxu0 0
        %494 = vmatpush.bf16.msra.mxu0 0
        %495 = vmatpush.bf16.msra.mxu0 0
        %496 = vmatpush.bf16.msra.mxu0 0
        %497 = vmatpush.bf16.msra.mxu0 0
        %498 = vmatpush.bf16.msra.mxu0 0
        %499 = vmatpush.bf16.msra.mxu0 %v477
        %500 = vmatmul.bf16.gmra.mxu0 %v471
        %v501 = vpop.f32.mrf.mxu0
        %v502 = vadd.f32 %v462, %v501
        %v503 = vpop.f32.mrf.mxu0
        %504 = vdwg.mxu0
        %v505 = vld [vmem:[%s205] sm:$0xff]
        %v506 = vld [vmem:[%s205 + $0x8] sm:$0xf]
        %s507 = scalar_lea.vmem [#allocation6], 24
        %v508 = vld [vmem:[%s507] sm:$0xf]
        %v511 = vunpack.c.l.b16 %v505
        %v512 = vunpack.c.h.b16 %v505
        %v513 = vunpack.c.l.b16 %v506
        %v514 = vpack.c.b16 %v511, %v511
        %v515 = vpack.c.b16 %v512, %v512
        %v516 = vpack.c.b16 %v513, %v513
        %517 = vrot.lane.b32.xlu0 %v514, 112
        %v518 = vpop.permute.xlu0 %517
        %519 = vrot.lane.b32.xlu0 %v515, 112
        %v520 = vpop.permute.xlu0 %519
        %521 = vrot.lane.b32.xlu0 %v516, 112
        %v522 = vpop.permute.xlu0 %521
        %v523 = vsel %vm309, %v518, %v520
        %v524 = vsel %vm309, %v520, %v522
        %v526 = vsel %vm214, %v508, 0
        %v529 = vsel %vm218, %v523, 0
        %v532 = vsel %vm218, %v524, 0
        %534 = vmatpush.bf16.msra.mxu0 0
        %535 = vmatpush.bf16.msra.mxu0 0
        %536 = vmatpush.bf16.msra.mxu0 0
        %537 = vmatpush.bf16.msra.mxu0 0
        %538 = vmatpush.bf16.msra.mxu0 0
        %539 = vmatpush.bf16.msra.mxu0 0
        %540 = vmatpush.bf16.msra.mxu0 0
        %541 = vmatpush.bf16.msra.mxu0 %v529
        %542 = vmatmul.bf16.gmra.mxu0 %v526
        %v543 = vpop.f32.mrf.mxu0
        %v544 = vadd.f32 0.0, %v543
        %v545 = vpop.f32.mrf.mxu0
        %546 = vdwg.mxu0
        %547 = vmatpush.bf16.msra.mxu0 0
        %548 = vmatpush.bf16.msra.mxu0 0
        %549 = vmatpush.bf16.msra.mxu0 0
        %550 = vmatpush.bf16.msra.mxu0 0
        %551 = vmatpush.bf16.msra.mxu0 0
        %552 = vmatpush.bf16.msra.mxu0 0
        %553 = vmatpush.bf16.msra.mxu0 0
        %554 = vmatpush.bf16.msra.mxu0 %v532
        %555 = vmatmul.bf16.gmra.mxu0 %v526
        %v556 = vpop.f32.mrf.mxu0
        %v557 = vadd.f32 0.0, %v556
        %v558 = vpop.f32.mrf.mxu0
        %559 = vdwg.mxu0
        %v560 = vadd.f32 %v489, %v544
        %v561 = vadd.f32 %v502, %v557
        %v562 = vld [vmem:[%s421] sm:$0xff]
        %v563 = vld [vmem:[%s421 + $0x8] sm:$0xf]
        %s564 = scalar_lea.vmem [#allocation6], 28
        %v565 = vld [vmem:[%s564] sm:$0xf]
        %v568 = vunpack.c.l.b16 %v562
        %v569 = vunpack.c.h.b16 %v562
        %v570 = vunpack.c.l.b16 %v563
        %v571 = vpack.c.b16 %v568, %v568
        %v572 = vpack.c.b16 %v569, %v569
        %v573 = vpack.c.b16 %v570, %v570
        %574 = vrot.lane.b32.xlu0 %v571, 112
        %v575 = vpop.permute.xlu0 %574
        %576 = vrot.lane.b32.xlu0 %v572, 112
        %v577 = vpop.permute.xlu0 %576
        %578 = vrot.lane.b32.xlu0 %v573, 112
        %v579 = vpop.permute.xlu0 %578
        %v580 = vsel %vm309, %v575, %v577
        %v581 = vsel %vm309, %v577, %v579
        %v583 = vsel %vm214, %v565, 0
        %v586 = vsel %vm218, %v580, 0
        %v589 = vsel %vm218, %v581, 0
        %591 = vmatpush.bf16.msra.mxu0 0
        %592 = vmatpush.bf16.msra.mxu0 0
        %593 = vmatpush.bf16.msra.mxu0 0
        %594 = vmatpush.bf16.msra.mxu0 0
        %595 = vmatpush.bf16.msra.mxu0 0
        %596 = vmatpush.bf16.msra.mxu0 0
        %597 = vmatpush.bf16.msra.mxu0 0
        %598 = vmatpush.bf16.msra.mxu0 %v586
        %599 = vmatmul.bf16.gmra.mxu0 %v583
        %v600 = vpop.f32.mrf.mxu0
        %v601 = vadd.f32 0.0, %v600
        %v602 = vpop.f32.mrf.mxu0
        %603 = vdwg.mxu0
        %604 = vmatpush.bf16.msra.mxu0 0
        %605 = vmatpush.bf16.msra.mxu0 0
        %606 = vmatpush.bf16.msra.mxu0 0
        %607 = vmatpush.bf16.msra.mxu0 0
        %608 = vmatpush.bf16.msra.mxu0 0
        %609 = vmatpush.bf16.msra.mxu0 0
        %610 = vmatpush.bf16.msra.mxu0 0
        %611 = vmatpush.bf16.msra.mxu0 %v589
        %612 = vmatmul.bf16.gmra.mxu0 %v583
        %v613 = vpop.f32.mrf.mxu0
        %v614 = vadd.f32 0.0, %v613
        %v615 = vpop.f32.mrf.mxu0
        %616 = vdwg.mxu0
        %v617 = vadd.f32 %v560, %v601
        %v618 = vadd.f32 %v561, %v614
        %s619 = scalar_lea.vmem [#allocation2], 16
        %620 = vst [vmem:[%s619] sm:$0xff] %v617
        %621 = vst [vmem:[%s619 + $0x8] sm:$0xff] %v618
        %v622 = vadd.f32 %v617, %v618
        %623 = vadd.xlane.f32.xlu0 %v622
        %v624 = vpop.xlane.xlu0 %623
        %v625 = vadd.f32 %v411, %v624
        %v626 = vmul.f32 %v617, %v617
        %v627 = vmul.f32 %v618, %v618
        %v628 = vadd.f32 %v626, %v627
        %629 = vadd.xlane.f32.xlu0 %v628
        %v630 = vpop.xlane.xlu0 %629
        %v631 = vadd.f32 %v417, %v630
        %v632 = vld [vmem:[%s175] sm:$0xff]
        %v633 = vld [vmem:[%s175 + $0x8] sm:$0xf]
        %s634 = scalar_lea.vmem [#allocation6], 32
        %v635 = vld [vmem:[%s634] sm:$0xf]
        %v636 = vld [vmem:[%s205] sm:$0xff]
        %v637 = vld [vmem:[%s205 + $0x8] sm:$0xf]
        %s638 = scalar_lea.vmem [#allocation6], 36
        %v639 = vld [vmem:[%s638] sm:$0xf]
        %v642 = vunpack.c.l.b16 %v636
        %v643 = vunpack.c.h.b16 %v636
        %v644 = vunpack.c.l.b16 %v637
        %v645 = vpack.c.b16 %v642, %v642
        %v646 = vpack.c.b16 %v643, %v643
        %v647 = vpack.c.b16 %v644, %v644
        %648 = vrot.lane.b32.xlu0 %v645, 112
        %v649 = vpop.permute.xlu0 %648
        %650 = vrot.lane.b32.xlu0 %v646, 112
        %v651 = vpop.permute.xlu0 %650
        %652 = vrot.lane.b32.xlu0 %v647, 112
        %v653 = vpop.permute.xlu0 %652
        %v654 = vsel %vm309, %v649, %v651
        %v655 = vsel %vm309, %v651, %v653
        %v657 = vsel %vm214, %v639, 0
        %v660 = vsel %vm218, %v654, 0
        %v663 = vsel %vm218, %v655, 0
        %665 = vmatpush.bf16.msra.mxu0 0
        %666 = vmatpush.bf16.msra.mxu0 0
        %667 = vmatpush.bf16.msra.mxu0 0
        %668 = vmatpush.bf16.msra.mxu0 0
        %669 = vmatpush.bf16.msra.mxu0 0
        %670 = vmatpush.bf16.msra.mxu0 0
        %671 = vmatpush.bf16.msra.mxu0 0
        %672 = vmatpush.bf16.msra.mxu0 %v660
        %673 = vmatmul.bf16.gmra.mxu0 %v657
        %v674 = vpop.f32.mrf.mxu0
        %v675 = vadd.f32 0.0, %v674
        %v676 = vpop.f32.mrf.mxu0
        %677 = vdwg.mxu0
        %678 = vmatpush.bf16.msra.mxu0 0
        %679 = vmatpush.bf16.msra.mxu0 0
        %680 = vmatpush.bf16.msra.mxu0 0
        %681 = vmatpush.bf16.msra.mxu0 0
        %682 = vmatpush.bf16.msra.mxu0 0
        %683 = vmatpush.bf16.msra.mxu0 0
        %684 = vmatpush.bf16.msra.mxu0 0
        %685 = vmatpush.bf16.msra.mxu0 %v663
        %686 = vmatmul.bf16.gmra.mxu0 %v657
        %v687 = vpop.f32.mrf.mxu0
        %v688 = vadd.f32 0.0, %v687
        %v689 = vpop.f32.mrf.mxu0
        %690 = vdwg.mxu0
        %v693 = vunpack.c.l.b16 %v632
        %v694 = vunpack.c.h.b16 %v632
        %v695 = vunpack.c.l.b16 %v633
        %v696 = vpack.c.b16 %v693, %v693
        %v697 = vpack.c.b16 %v694, %v694
        %v698 = vpack.c.b16 %v695, %v695
        %699 = vrot.lane.b32.xlu0 %v696, 112
        %v700 = vpop.permute.xlu0 %699
        %701 = vrot.lane.b32.xlu0 %v697, 112
        %v702 = vpop.permute.xlu0 %701
        %703 = vrot.lane.b32.xlu0 %v698, 112
        %v704 = vpop.permute.xlu0 %703
        %v705 = vsel %vm309, %v700, %v702
        %v706 = vsel %vm309, %v702, %v704
        %v708 = vsel %vm214, %v635, 0
        %v711 = vsel %vm218, %v705, 0
        %v714 = vsel %vm218, %v706, 0
        %716 = vmatpush.bf16.msra.mxu0 0
        %717 = vmatpush.bf16.msra.mxu0 0
        %718 = vmatpush.bf16.msra.mxu0 0
        %719 = vmatpush.bf16.msra.mxu0 0
        %720 = vmatpush.bf16.msra.mxu0 0
        %721 = vmatpush.bf16.msra.mxu0 0
        %722 = vmatpush.bf16.msra.mxu0 0
        %723 = vmatpush.bf16.msra.mxu0 %v711
        %724 = vmatmul.bf16.gmra.mxu0 %v708
        %v725 = vpop.f32.mrf.mxu0
        %v726 = vadd.f32 %v675, %v725
        %v727 = vpop.f32.mrf.mxu0
        %728 = vdwg.mxu0
        %729 = vmatpush.bf16.msra.mxu0 0
        %730 = vmatpush.bf16.msra.mxu0 0
        %731 = vmatpush.bf16.msra.mxu0 0
        %732 = vmatpush.bf16.msra.mxu0 0
        %733 = vmatpush.bf16.msra.mxu0 0
        %734 = vmatpush.bf16.msra.mxu0 0
        %735 = vmatpush.bf16.msra.mxu0 0
        %736 = vmatpush.bf16.msra.mxu0 %v714
        %737 = vmatmul.bf16.gmra.mxu0 %v708
        %v738 = vpop.f32.mrf.mxu0
        %v739 = vadd.f32 %v688, %v738
        %v740 = vpop.f32.mrf.mxu0
        %741 = vdwg.mxu0
        %s742 = scalar_lea.vmem [#allocation6], 40
        %v743 = vld [vmem:[%s742] sm:$0xf]
        %744 = vrot.lane.b32.xlu0 %v696, 96
        %v745 = vpop.permute.xlu0 %744
        %746 = vrot.lane.b32.xlu0 %v697, 96
        %v747 = vpop.permute.xlu0 %746
        %748 = vrot.lane.b32.xlu0 %v698, 96
        %v749 = vpop.permute.xlu0 %748
        %vm750 = vcmask 785408
        %v751 = vsel %vm750, %v745, %v747
        %v752 = vsel %vm750, %v747, %v749
        %v754 = vsel %vm214, %v743, 0
        %v757 = vsel %vm218, %v751, 0
        %v760 = vsel %vm218, %v752, 0
        %762 = vmatpush.bf16.msra.mxu0 0
        %763 = vmatpush.bf16.msra.mxu0 0
        %764 = vmatpush.bf16.msra.mxu0 0
        %765 = vmatpush.bf16.msra.mxu0 0
        %766 = vmatpush.bf16.msra.mxu0 0
        %767 = vmatpush.bf16.msra.mxu0 0
        %768 = vmatpush.bf16.msra.mxu0 0
        %769 = vmatpush.bf16.msra.mxu0 %v757
        %770 = vmatmul.bf16.gmra.mxu0 %v754
        %v771 = vpop.f32.mrf.mxu0
        %v772 = vadd.f32 0.0, %v771
        %v773 = vpop.f32.mrf.mxu0
        %774 = vdwg.mxu0
        %775 = vmatpush.bf16.msra.mxu0 0
        %776 = vmatpush.bf16.msra.mxu0 0
        %777 = vmatpush.bf16.msra.mxu0 0
        %778 = vmatpush.bf16.msra.mxu0 0
        %779 = vmatpush.bf16.msra.mxu0 0
        %780 = vmatpush.bf16.msra.mxu0 0
        %781 = vmatpush.bf16.msra.mxu0 0
        %782 = vmatpush.bf16.msra.mxu0 %v760
        %783 = vmatmul.bf16.gmra.mxu0 %v754
        %v784 = vpop.f32.mrf.mxu0
        %v785 = vadd.f32 0.0, %v784
        %v786 = vpop.f32.mrf.mxu0
        %787 = vdwg.mxu0
        %v788 = vadd.f32 %v726, %v772
        %v789 = vadd.f32 %v739, %v785
        %s790 = scalar_lea.vmem [#allocation6], 44
        %v791 = vld [vmem:[%s790] sm:$0xf]
        %792 = vrot.lane.b32.xlu0 %v645, 96
        %v793 = vpop.permute.xlu0 %792
        %794 = vrot.lane.b32.xlu0 %v646, 96
        %v795 = vpop.permute.xlu0 %794
        %796 = vrot.lane.b32.xlu0 %v647, 96
        %v797 = vpop.permute.xlu0 %796
        %v798 = vsel %vm750, %v793, %v795
        %v799 = vsel %vm750, %v795, %v797
        %v801 = vsel %vm214, %v791, 0
        %v804 = vsel %vm218, %v798, 0
        %v807 = vsel %vm218, %v799, 0
        %809 = vmatpush.bf16.msra.mxu0 0
        %810 = vmatpush.bf16.msra.mxu0 0
        %811 = vmatpush.bf16.msra.mxu0 0
        %812 = vmatpush.bf16.msra.mxu0 0
        %813 = vmatpush.bf16.msra.mxu0 0
        %814 = vmatpush.bf16.msra.mxu0 0
        %815 = vmatpush.bf16.msra.mxu0 0
        %816 = vmatpush.bf16.msra.mxu0 %v804
        %817 = vmatmul.bf16.gmra.mxu0 %v801
        %v818 = vpop.f32.mrf.mxu0
        %v819 = vadd.f32 0.0, %v818
        %v820 = vpop.f32.mrf.mxu0
        %821 = vdwg.mxu0
        %822 = vmatpush.bf16.msra.mxu0 0
        %823 = vmatpush.bf16.msra.mxu0 0
        %824 = vmatpush.bf16.msra.mxu0 0
        %825 = vmatpush.bf16.msra.mxu0 0
        %826 = vmatpush.bf16.msra.mxu0 0
        %827 = vmatpush.bf16.msra.mxu0 0
        %828 = vmatpush.bf16.msra.mxu0 0
        %829 = vmatpush.bf16.msra.mxu0 %v807
        %830 = vmatmul.bf16.gmra.mxu0 %v801
        %v831 = vpop.f32.mrf.mxu0
        %v832 = vadd.f32 0.0, %v831
        %v833 = vpop.f32.mrf.mxu0
        %834 = vdwg.mxu0
        %v835 = vadd.f32 %v788, %v819
        %v836 = vadd.f32 %v789, %v832
        %s837 = scalar_lea.vmem [#allocation2], 32
        %838 = vst [vmem:[%s837] sm:$0xff] %v835
        %839 = vst [vmem:[%s837 + $0x8] sm:$0xff] %v836
        %v840 = vadd.f32 %v835, %v836
        %841 = vadd.xlane.f32.xlu0 %v840
        %v842 = vpop.xlane.xlu0 %841
        %v843 = vadd.f32 %v625, %v842
        %v844 = vmul.f32 %v835, %v835
        %v845 = vmul.f32 %v836, %v836
        %v846 = vadd.f32 %v844, %v845
        %847 = vadd.xlane.f32.xlu0 %v846
        %v848 = vpop.xlane.xlu0 %847
        %v849 = vadd.f32 %v631, %v848
        %v850 = vld [vmem:[%s205] sm:$0xff]
        %v851 = vld [vmem:[%s205 + $0x8] sm:$0xf]
        %s852 = scalar_lea.vmem [#allocation6], 48
        %v853 = vld [vmem:[%s852] sm:$0xf]
        %v854 = vld [vmem:[%s421] sm:$0xff]
        %v855 = vld [vmem:[%s421 + $0x8] sm:$0xf]
        %s856 = scalar_lea.vmem [#allocation6], 52
        %v857 = vld [vmem:[%s856] sm:$0xf]
        %v860 = vunpack.c.l.b16 %v854
        %v861 = vunpack.c.h.b16 %v854
        %v862 = vunpack.c.l.b16 %v855
        %v863 = vpack.c.b16 %v860, %v860
        %v864 = vpack.c.b16 %v861, %v861
        %v865 = vpack.c.b16 %v862, %v862
        %866 = vrot.lane.b32.xlu0 %v863, 112
        %v867 = vpop.permute.xlu0 %866
        %868 = vrot.lane.b32.xlu0 %v864, 112
        %v869 = vpop.permute.xlu0 %868
        %870 = vrot.lane.b32.xlu0 %v865, 112
        %v871 = vpop.permute.xlu0 %870
        %v872 = vsel %vm309, %v867, %v869
        %v873 = vsel %vm309, %v869, %v871
        %v875 = vsel %vm214, %v857, 0
        %v878 = vsel %vm218, %v872, 0
        %v881 = vsel %vm218, %v873, 0
        %883 = vmatpush.bf16.msra.mxu0 0
        %884 = vmatpush.bf16.msra.mxu0 0
        %885 = vmatpush.bf16.msra.mxu0 0
        %886 = vmatpush.bf16.msra.mxu0 0
        %887 = vmatpush.bf16.msra.mxu0 0
        %888 = vmatpush.bf16.msra.mxu0 0
        %889 = vmatpush.bf16.msra.mxu0 0
        %890 = vmatpush.bf16.msra.mxu0 %v878
        %891 = vmatmul.bf16.gmra.mxu0 %v875
        %v892 = vpop.f32.mrf.mxu0
        %v893 = vadd.f32 0.0, %v892
        %v894 = vpop.f32.mrf.mxu0
        %895 = vdwg.mxu0
        %896 = vmatpush.bf16.msra.mxu0 0
        %897 = vmatpush.bf16.msra.mxu0 0
        %898 = vmatpush.bf16.msra.mxu0 0
        %899 = vmatpush.bf16.msra.mxu0 0
        %900 = vmatpush.bf16.msra.mxu0 0
        %901 = vmatpush.bf16.msra.mxu0 0
        %902 = vmatpush.bf16.msra.mxu0 0
        %903 = vmatpush.bf16.msra.mxu0 %v881
        %904 = vmatmul.bf16.gmra.mxu0 %v875
        %v905 = vpop.f32.mrf.mxu0
        %v906 = vadd.f32 0.0, %v905
        %v907 = vpop.f32.mrf.mxu0
        %908 = vdwg.mxu0
        %v911 = vunpack.c.l.b16 %v850
        %v912 = vunpack.c.h.b16 %v850
        %v913 = vunpack.c.l.b16 %v851
        %v914 = vpack.c.b16 %v911, %v911
        %v915 = vpack.c.b16 %v912, %v912
        %v916 = vpack.c.b16 %v913, %v913
        %917 = vrot.lane.b32.xlu0 %v914, 112
        %v918 = vpop.permute.xlu0 %917
        %919 = vrot.lane.b32.xlu0 %v915, 112
        %v920 = vpop.permute.xlu0 %919
        %921 = vrot.lane.b32.xlu0 %v916, 112
        %v922 = vpop.permute.xlu0 %921
        %v923 = vsel %vm309, %v918, %v920
        %v924 = vsel %vm309, %v920, %v922
        %v926 = vsel %vm214, %v853, 0
        %v929 = vsel %vm218, %v923, 0
        %v932 = vsel %vm218, %v924, 0
        %934 = vmatpush.bf16.msra.mxu0 0
        %935 = vmatpush.bf16.msra.mxu0 0
        %936 = vmatpush.bf16.msra.mxu0 0
        %937 = vmatpush.bf16.msra.mxu0 0
        %938 = vmatpush.bf16.msra.mxu0 0
        %939 = vmatpush.bf16.msra.mxu0 0
        %940 = vmatpush.bf16.msra.mxu0 0
        %941 = vmatpush.bf16.msra.mxu0 %v929
        %942 = vmatmul.bf16.gmra.mxu0 %v926
        %v943 = vpop.f32.mrf.mxu0
        %v944 = vadd.f32 %v893, %v943
        %v945 = vpop.f32.mrf.mxu0
        %946 = vdwg.mxu0
        %947 = vmatpush.bf16.msra.mxu0 0
        %948 = vmatpush.bf16.msra.mxu0 0
        %949 = vmatpush.bf16.msra.mxu0 0
        %950 = vmatpush.bf16.msra.mxu0 0
        %951 = vmatpush.bf16.msra.mxu0 0
        %952 = vmatpush.bf16.msra.mxu0 0
        %953 = vmatpush.bf16.msra.mxu0 0
        %954 = vmatpush.bf16.msra.mxu0 %v932
        %955 = vmatmul.bf16.gmra.mxu0 %v926
        %v956 = vpop.f32.mrf.mxu0
        %v957 = vadd.f32 %v906, %v956
        %v958 = vpop.f32.mrf.mxu0
        %959 = vdwg.mxu0
        %s960 = scalar_lea.vmem [#allocation6], 56
        %v961 = vld [vmem:[%s960] sm:$0xf]
        %962 = vrot.lane.b32.xlu0 %v914, 96
        %v963 = vpop.permute.xlu0 %962
        %964 = vrot.lane.b32.xlu0 %v915, 96
        %v965 = vpop.permute.xlu0 %964
        %966 = vrot.lane.b32.xlu0 %v916, 96
        %v967 = vpop.permute.xlu0 %966
        %v968 = vsel %vm750, %v963, %v965
        %v969 = vsel %vm750, %v965, %v967
        %v971 = vsel %vm214, %v961, 0
        %v974 = vsel %vm218, %v968, 0
        %v977 = vsel %vm218, %v969, 0
        %979 = vmatpush.bf16.msra.mxu0 0
        %980 = vmatpush.bf16.msra.mxu0 0
        %981 = vmatpush.bf16.msra.mxu0 0
        %982 = vmatpush.bf16.msra.mxu0 0
        %983 = vmatpush.bf16.msra.mxu0 0
        %984 = vmatpush.bf16.msra.mxu0 0
        %985 = vmatpush.bf16.msra.mxu0 0
        %986 = vmatpush.bf16.msra.mxu0 %v974
        %987 = vmatmul.bf16.gmra.mxu0 %v971
        %v988 = vpop.f32.mrf.mxu0
        %v989 = vadd.f32 0.0, %v988
        %v990 = vpop.f32.mrf.mxu0
        %991 = vdwg.mxu0
        %992 = vmatpush.bf16.msra.mxu0 0
        %993 = vmatpush.bf16.msra.mxu0 0
        %994 = vmatpush.bf16.msra.mxu0 0
        %995 = vmatpush.bf16.msra.mxu0 0
        %996 = vmatpush.bf16.msra.mxu0 0
        %997 = vmatpush.bf16.msra.mxu0 0
        %998 = vmatpush.bf16.msra.mxu0 0
        %999 = vmatpush.bf16.msra.mxu0 %v977
        %1000 = vmatmul.bf16.gmra.mxu0 %v971
        %v1001 = vpop.f32.mrf.mxu0
        %v1002 = vadd.f32 0.0, %v1001
        %v1003 = vpop.f32.mrf.mxu0
        %1004 = vdwg.mxu0
        %v1005 = vadd.f32 %v944, %v989
        %v1006 = vadd.f32 %v957, %v1002
        %s1007 = scalar_lea.vmem [#allocation6], 60
        %v1008 = vld [vmem:[%s1007] sm:$0xf]
        %1009 = vrot.lane.b32.xlu0 %v863, 96
        %v1010 = vpop.permute.xlu0 %1009
        %1011 = vrot.lane.b32.xlu0 %v864, 96
        %v1012 = vpop.permute.xlu0 %1011
        %1013 = vrot.lane.b32.xlu0 %v865, 96
        %v1014 = vpop.permute.xlu0 %1013
        %v1015 = vsel %vm750, %v1010, %v1012
        %v1016 = vsel %vm750, %v1012, %v1014
        %v1018 = vsel %vm214, %v1008, 0
        %v1021 = vsel %vm218, %v1015, 0
        %v1024 = vsel %vm218, %v1016, 0
        %1026 = vmatpush.bf16.msra.mxu0 0
        %1027 = vmatpush.bf16.msra.mxu0 0
        %1028 = vmatpush.bf16.msra.mxu0 0
        %1029 = vmatpush.bf16.msra.mxu0 0
        %1030 = vmatpush.bf16.msra.mxu0 0
        %1031 = vmatpush.bf16.msra.mxu0 0
        %1032 = vmatpush.bf16.msra.mxu0 0
        %1033 = vmatpush.bf16.msra.mxu0 %v1021
        %1034 = vmatmul.bf16.gmra.mxu0 %v1018
        %v1035 = vpop.f32.mrf.mxu0
        %v1036 = vadd.f32 0.0, %v1035
        %v1037 = vpop.f32.mrf.mxu0
        %1038 = vdwg.mxu0
        %1039 = vmatpush.bf16.msra.mxu0 0
        %1040 = vmatpush.bf16.msra.mxu0 0
        %1041 = vmatpush.bf16.msra.mxu0 0
        %1042 = vmatpush.bf16.msra.mxu0 0
        %1043 = vmatpush.bf16.msra.mxu0 0
        %1044 = vmatpush.bf16.msra.mxu0 0
        %1045 = vmatpush.bf16.msra.mxu0 0
        %1046 = vmatpush.bf16.msra.mxu0 %v1024
        %1047 = vmatmul.bf16.gmra.mxu0 %v1018
        %v1048 = vpop.f32.mrf.mxu0
        %v1049 = vadd.f32 0.0, %v1048
        %v1050 = vpop.f32.mrf.mxu0
        %1051 = vdwg.mxu0
        %v1052 = vadd.f32 %v1005, %v1036
        %v1053 = vadd.f32 %v1006, %v1049
        %s1054 = scalar_lea.vmem [#allocation2], 48
        %1055 = vst [vmem:[%s1054] sm:$0xff] %v1052
        %1056 = vst [vmem:[%s1054 + $0x8] sm:$0xff] %v1053
        %v1057 = vadd.f32 %v1052, %v1053
        %1058 = vadd.xlane.f32.xlu0 %v1057
        %v1059 = vpop.xlane.xlu0 %1058
        %v1060 = vadd.f32 %v843, %v1059
        %v1061 = vmul.f32 %v1052, %v1052
        %v1062 = vmul.f32 %v1053, %v1053
        %v1063 = vadd.f32 %v1061, %v1062
        %1064 = vadd.xlane.f32.xlu0 %v1063
        %v1065 = vpop.xlane.xlu0 %1064
        %v1066 = vadd.f32 %v849, %v1065
        %v1067 = vmul.f32 %v1060, 0.0009765625
        %v1068 = vmul.f32 %v1066, 0.0009765625
        %v1069 = vmul.f32 %v1067, %v1067
        %v1070 = vsub.f32 %v1068, %v1069
        %v1071 = vmax.f32 %v1070, 0.0
        %v1072 = vadd.f32 %v1071, 1e-05
        %v1073 = vrsqrt.pop %v1072
        %v1074 = vmul.f32 %v1073, %v1072
        %v1075 = vmul.f32 %v1074, %v1073
        %v1076 = vmul.f32 0.5, %v1075
        %v1077 = vsub.f32 1.5, %v1076
        %v1078 = vmul.f32 %v1073, %v1077
        %vm1079 = vweird.f32 %v1072
        %vm1080 = vweird.f32 %v1073
        %vm1081 = vmor %vm1079, %vm1080
        %v1082 = vsel %vm1081, %v1073, %v1078
        %v1083 = vld [vmem:[#allocation2] sm:$0xff]
        %v1084 = vld [vmem:[#allocation2 + $0x8] sm:$0xff]
        %v1085 = vsub.f32 %v1083, %v1067
        %v1086 = vsub.f32 %v1084, %v1067
        %v1087 = vmul.f32 %v1085, %v1082
        %v1088 = vmul.f32 %v1086, %v1082
        %v1089 = vmax.f32 %v1087, 0.0
        %v1090 = vmax.f32 %v1088, 0.0
        %v1091 = vpack.c.bf16 %v1090, %v1089
        %1092 = vst [vmem:[%s201] sm:$0xff] %v1091
        %v1093 = vld [vmem:[%s619] sm:$0xff]
        %v1094 = vld [vmem:[%s619 + $0x8] sm:$0xff]
        %v1095 = vsub.f32 %v1093, %v1067
        %v1096 = vsub.f32 %v1094, %v1067
        %v1097 = vmul.f32 %v1095, %v1082
        %v1098 = vmul.f32 %v1096, %v1082
        %v1099 = vmax.f32 %v1097, 0.0
        %v1100 = vmax.f32 %v1098, 0.0
        %v1101 = vpack.c.bf16 %v1100, %v1099
        %s1102 = scalar_lea.vmem %s201, 8 [#allocation8]
        %1103 = vst [vmem:[%s1102] sm:$0xff] %v1101
        %v1104 = vld [vmem:[%s837] sm:$0xff]
        %v1105 = vld [vmem:[%s837 + $0x8] sm:$0xff]
        %v1106 = vsub.f32 %v1104, %v1067
        %v1107 = vsub.f32 %v1105, %v1067
        %v1108 = vmul.f32 %v1106, %v1082
        %v1109 = vmul.f32 %v1107, %v1082
        %v1110 = vmax.f32 %v1108, 0.0
        %v1111 = vmax.f32 %v1109, 0.0
        %v1112 = vpack.c.bf16 %v1111, %v1110
        %s1113 = scalar_lea.vmem %s201, 16 [#allocation8]
        %1114 = vst [vmem:[%s1113] sm:$0xff] %v1112
        %v1115 = vld [vmem:[%s1054] sm:$0xff]
        %v1116 = vld [vmem:[%s1054 + $0x8] sm:$0xff]
        %v1117 = vsub.f32 %v1115, %v1067
        %v1118 = vsub.f32 %v1116, %v1067
        %v1119 = vmul.f32 %v1117, %v1082
        %v1120 = vmul.f32 %v1118, %v1082
        %v1121 = vmax.f32 %v1119, 0.0
        %v1122 = vmax.f32 %v1120, 0.0
        %v1123 = vpack.c.bf16 %v1122, %v1121
        %s1124 = scalar_lea.vmem %s201, 24 [#allocation8]
        %1125 = vst [vmem:[%s1124] sm:$0xff] %v1123
        %s1126 = sand.u32 %s94, 1
        %s1127 = scalar_lea.sflag [#allocation5], %s1126
        %s1128 = sand.u32 %s94, 1
        %s1129 = smul.addr %s1128, 32
        %s1130 = scalar_lea.vmem [#allocation8], %s1129
        // Predicated region
        $region37: #{tpu_custom_call.1} parent=27 // pred_check
          %p1131 = pneg %p104
        $region38: #{tpu_custom_call.1} parent=27 // pred_check_branch
          %1133 = sbr.rel (%p1131) target = $region40
        $region39: #{tpu_custom_call.1} parent=27 // pred_region
          %1135 = vsyncadd %s1127, 0
          %s1136 = smul.addr %s25, 2
          %s1137 = smul.addr %s24, 8
          %s1138 = sadd.s32 %s1136, %s1137
          %s1139 = smul.addr %s1138, 4
          %s1140 = scalar_lea.hbm %s2, %s1139
          %s1141 = sshll.u32 %s1130, 4
          %s1142 = int_to_ptr.vmem [resolvable:$true] %s1141
          %s1143 = sshll.u32 %s1140, 4
          %s1144 = int_to_ptr.hbm [resolvable:$true] %s1143
          %1149 = dma.vmem_to_hbm [thread:$0]  %s1142, 512, %s1144, %s1127, 128, 128, 8
        $region40: #{tpu_custom_call.1} parent=27 // pred_fallthru
          _
      $region28: #{tpu_custom_call.1} parent=5 // pred_fallthru
        _
      %p1150 = scmp.le.s32.totalorder 2, %s15
      // Predicated region
      $region41: #{tpu_custom_call.1} parent=5 // pred_check
        %p1151 = pneg %p1150
      $region42: #{tpu_custom_call.1} parent=5 // pred_check_branch
        %1153 = sbr.rel (%p1151) target = $region44
      $region43: #{tpu_custom_call.1} parent=5 // pred_region
        %s1154 = ssub.s32 %s15, 2
        // Predicated region
        $region45: #{tpu_custom_call.1} parent=43 // pred_check
          %p1155 = pneg %p110
        $region46: #{tpu_custom_call.1} parent=43 // pred_check_branch
          %1157 = sbr.rel (%p1155) target = $region48
        $region47: #{tpu_custom_call.1} parent=43 // pred_region
          %s1158 = sand.u32 %s95, 1
          %s1159 = scalar_lea.sflag [#allocation5], %s1158
          %s1160 = sand.u32 %s95, 1
          %s1161 = smul.addr %s1160, 32
          %s1162 = scalar_lea.vmem [#allocation8], %s1161
          %1164 = dma.done %s1159, 512
        $region48: #{tpu_custom_call.1} parent=43 // pred_fallthru
          _
      $region44: #{tpu_custom_call.1} parent=5 // pred_fallthru
        _
    $region6: #{tpu_custom_call.1} parent=1 // loop_footer
      %s19 = sadd.s32 1, %s15
    $region7: #{tpu_custom_call.1} parent=1 // loop_footer_branch
      %14 = sbr.rel target = $region3
    $region8: #{tpu_custom_call.1} parent=1 // loop_exit
      _
    %1165 = vsyncpa [#allocation4], 1
    %s1166 = scalar_lea.sflag [#allocation4], 1
    %1167 = vsyncpa %s1166, 1
    %1168 = vsyncpa [#allocation7], 1
    %1169 = vsyncpa [#allocation5], 1
    %s1170 = scalar_lea.sflag [#allocation5], 1
    %1171 = vsyncpa %s1170, 1

</llo_original>
